<compile_context>
chip_gen: v5e
topology: v5e:2x2
jax: 0.10.0
libtpu: 0.0.40
codegen_flags: <defaults>
</compile_context>

<pallas_src>
import functools
import math

import jax
import jax.numpy as jnp
from jax.experimental import pallas as pl
from jax.experimental.pallas import tpu as pltpu


# ------------------------------ in-kernel math -------------------------------

def _layer_norm(x, g, b, eps):
    mean = jnp.mean(x, axis=-1, keepdims=True)
    var = jnp.mean(jnp.square(x - mean), axis=-1, keepdims=True)
    return (x - mean) * jax.lax.rsqrt(var + eps) * g + b


def _gelu(x):
    # BERT's exact (erf) GELU, in f32.
    return 0.5 * x * (1.0 + jax.lax.erf(x * (1.0 / math.sqrt(2.0))))


# ------------------------------ fused encoder kernel -------------------------

def _encoder_kernel(B, S, H, nh, dh, eps,
                    emb_ref, mask_ref, eg_ref, eb_ref,
                    wqkv_ref, bqkv_ref, wo_ref, bo_ref,
                    g1_ref, be1_ref,
                    w1_ref, bf1_ref, w2_ref, bf2_ref,
                    g2_ref, be2_ref,
                    out_ref, x_sc):
    """One grid step == one transformer layer; activations live in x_sc."""
    layer = pl.program_id(0)
    M = B * S
    scale = 1.0 / math.sqrt(dh)
    bf16 = jnp.bfloat16
    f32 = jnp.float32

    @pl.when(layer == 0)
    def _():
        # Embedding LayerNorm fused into the first grid step.
        x_sc[...] = _layer_norm(emb_ref[...], eg_ref[...], eb_ref[...], eps)

    x = x_sc[...]                                           # (M, H) f32, VMEM

    # ---- fused QKV projection (bf16 MXU operands, f32 accumulation) ----
    qkv = jnp.dot(x.astype(bf16), wqkv_ref[0],
                  preferred_element_type=f32) + bqkv_ref[0]  # (M, 3H) f32

    mask = mask_ref[...]                                     # (B, 1, S) additive
    wo = wo_ref[0]                                           # (H, H) bf16

    # ---- per-head attention; head-merge fused into the output projection ----
    attn = jnp.zeros((M, H), f32) + bo_ref[0]
    for h in range(nh):                                      # static unroll
        q_h = qkv[:, h * dh:(h + 1) * dh].reshape(B, S, dh)
        k_h = qkv[:, H + h * dh:H + (h + 1) * dh].reshape(B, S, dh)
        v_h = qkv[:, 2 * H + h * dh:2 * H + (h + 1) * dh].reshape(B, S, dh)

        s = jnp.einsum("bqd,bkd->bqk",
                       q_h.astype(bf16), k_h.astype(bf16),
                       preferred_element_type=f32) * scale
        s = s + mask
        s = s - jnp.max(s, axis=-1, keepdims=True)
        p = jnp.exp(s)
        p = p * pl.reciprocal(jnp.sum(p, axis=-1, keepdims=True), approx=True)

        ctx_h = jnp.einsum("bqk,bkd->bqd",
                           p.astype(bf16), v_h.astype(bf16),
                           preferred_element_type=f32).reshape(M, dh)
        # ctx @ Wo == sum_h ctx_h @ Wo[h*dh:(h+1)*dh, :]  (no concat/transpose)
        attn = attn + jnp.dot(ctx_h.astype(bf16),
                              wo[h * dh:(h + 1) * dh, :],
                              preferred_element_type=f32)

    # ---- residual + LayerNorm (fused) ----
    x = _layer_norm(x + attn, g1_ref[0], be1_ref[0], eps)

    # ---- feed-forward ----
    inter = _gelu(jnp.dot(x.astype(bf16), w1_ref[0],
                          preferred_element_type=f32) + bf1_ref[0])
    ffn = jnp.dot(inter.astype(bf16), w2_ref[0],
                  preferred_element_type=f32) + bf2_ref[0]
    x = _layer_norm(x + ffn, g2_ref[0], be2_ref[0], eps)

    x_sc[...] = x

    @pl.when(layer == pl.num_programs(0) - 1)
    def _():
        out_ref[...] = x


# ---------------------------- parameters & packing ---------------------------

class Config:
    vocab_size = 64
    hidden_size = 32
    num_hidden_layers = 2
    num_attention_heads = 4
    intermediate_size = 64
    max_position_embeddings = 16
    type_vocab_size = 2
    layer_norm_eps = 1e-12


def init_params(cfg, key):
    def dense(key, fan_in, fan_out):
        w = 0.02 * jax.random.normal(key, (fan_in, fan_out), jnp.float32)
        b = jnp.zeros((fan_out,), jnp.float32)
        return {"w": w, "b": b}

    keys = jax.random.split(key, 8 + cfg.num_hidden_layers)
    H, I = cfg.hidden_size, cfg.intermediate_size
    params = {
        "word_emb": 0.02 * jax.random.normal(keys[0], (cfg.vocab_size, H), jnp.float32),
        "pos_emb": 0.02 * jax.random.normal(keys[1], (cfg.max_position_embeddings, H), jnp.float32),
        "type_emb": 0.02 * jax.random.normal(keys[2], (cfg.type_vocab_size, H), jnp.float32),
        "emb_ln_g": jnp.ones((H,), jnp.float32),
        "emb_ln_b": jnp.zeros((H,), jnp.float32),
        "pooler": dense(keys[3], H, H),
        "layers": [],
    }
    for li in range(cfg.num_hidden_layers):
        k = jax.random.split(keys[8 + li], 6)
        params["layers"].append({
            "q": dense(k[0], H, H),
            "k": dense(k[1], H, H),
            "v": dense(k[2], H, H),
            "attn_out": dense(k[3], H, H),
            "attn_ln_g": jnp.ones((H,), jnp.float32),
            "attn_ln_b": jnp.zeros((H,), jnp.float32),
            "inter": dense(k[4], H, I),
            "out": dense(k[5], I, H),
            "out_ln_g": jnp.ones((H,), jnp.float32),
            "out_ln_b": jnp.zeros((H,), jnp.float32),
        })
    return params


def pack_params(params, cfg):
    """Stack per-layer weights (leading layer axis), fuse QKV, cast to bf16."""
    H, I = cfg.hidden_size, cfg.intermediate_size
    layers = params["layers"]
    stack = lambda f: jnp.stack([f(lp) for lp in layers])
    return {
        "word_emb": params["word_emb"],
        "pos_emb": params["pos_emb"],
        "type_emb": params["type_emb"],
        "emb_ln_g": params["emb_ln_g"].reshape(1, H),
        "emb_ln_b": params["emb_ln_b"].reshape(1, H),
        # Fused QKV: columns are [Wq | Wk | Wv].
        "wqkv": stack(lambda lp: jnp.concatenate(
            [lp["q"]["w"], lp["k"]["w"], lp["v"]["w"]], axis=1)).astype(jnp.bfloat16),
        "bqkv": stack(lambda lp: jnp.concatenate(
            [lp["q"]["b"], lp["k"]["b"], lp["v"]["b"]]).reshape(1, 3 * H)),
        "wo": stack(lambda lp: lp["attn_out"]["w"]).astype(jnp.bfloat16),
        "bo": stack(lambda lp: lp["attn_out"]["b"].reshape(1, H)),
        "ln1_g": stack(lambda lp: lp["attn_ln_g"].reshape(1, H)),
        "ln1_b": stack(lambda lp: lp["attn_ln_b"].reshape(1, H)),
        "w1": stack(lambda lp: lp["inter"]["w"]).astype(jnp.bfloat16),
        "b1": stack(lambda lp: lp["inter"]["b"].reshape(1, I)),
        "w2": stack(lambda lp: lp["out"]["w"]).astype(jnp.bfloat16),
        "b2": stack(lambda lp: lp["out"]["b"].reshape(1, H)),
        "ln2_g": stack(lambda lp: lp["out_ln_g"].reshape(1, H)),
        "ln2_b": stack(lambda lp: lp["out_ln_b"].reshape(1, H)),
        "pooler_w": params["pooler"]["w"],
        "pooler_b": params["pooler"]["b"],
    }


# ------------------------------ encoder forward -------------------------------

def encoder_forward(packed, cfg, input_ids, token_type_ids, attention_mask):
    """Returns (sequence_output, pooled_output) like Encoder.forward."""
    B, S = input_ids.shape
    H = cfg.hidden_size
    nh = cfg.num_attention_heads
    dh = H // nh
    I = cfg.intermediate_size
    L = cfg.num_hidden_layers
    M = B * S

    # ---- XLA glue: embedding gathers + additive attention mask ----
    positions = jnp.arange(S, dtype=jnp.int32)
    emb = (jnp.take(packed["word_emb"], input_ids, axis=0)
           + jnp.take(packed["pos_emb"], positions, axis=0)[None, :, :]
           + jnp.take(packed["type_emb"], token_type_ids, axis=0))
    emb2d = emb.reshape(M, H).astype(jnp.float32)
    ext_mask = ((1.0 - attention_mask.astype(jnp.float32)) * -10000.0)[:, None, :]  # (B,1,S)

    kernel = functools.partial(_encoder_kernel, B, S, H, nh, dh,
                               cfg.layer_norm_eps)

    def whole(shape):          # same block for every layer
        return pl.BlockSpec(shape, lambda i: (0,) * len(shape))

    def per_layer(shape):      # leading layer axis selected by grid index
        return pl.BlockSpec((1,) + shape, lambda i: (i,) + (0,) * len(shape))

    seq2d = pl.pallas_call(
        kernel,
        grid_spec=pltpu.PrefetchScalarGridSpec(
            num_scalar_prefetch=0,
            grid=(L,),
            in_specs=[
                whole((M, H)),                           # embeddings
                whole((B, 1, S)),                        # additive mask
                whole((1, H)), whole((1, H)),            # embedding LN g, b
                per_layer((H, 3 * H)), per_layer((1, 3 * H)),   # fused QKV
                per_layer((H, H)), per_layer((1, H)),           # attn out proj
                per_layer((1, H)), per_layer((1, H)),           # LN1 g, b
                per_layer((H, I)), per_layer((1, I)),           # FFN in
                per_layer((I, H)), per_layer((1, H)),           # FFN out
                per_layer((1, H)), per_layer((1, H)),           # LN2 g, b
            ],
            out_specs=pl.BlockSpec((M, H), lambda i: (0, 0)),
            scratch_shapes=[pltpu.VMEM((M, H), jnp.float32)],
        ),
        out_shape=jax.ShapeDtypeStruct((M, H), jnp.float32),
        compiler_params=pltpu.CompilerParams(
            dimension_semantics=("arbitrary",)),   # sequential layer carry
    )(emb2d, ext_mask,
      packed["emb_ln_g"], packed["emb_ln_b"],
      packed["wqkv"], packed["bqkv"], packed["wo"], packed["bo"],
      packed["ln1_g"], packed["ln1_b"],
      packed["w1"], packed["b1"], packed["w2"], packed["b2"],
      packed["ln2_g"], packed["ln2_b"])

    sequence_output = seq2d.reshape(B, S, H)
    # Pooler (dense + tanh on the [CLS] token): plain XLA, too small for a kernel.
    cls = sequence_output[:, 0, :]
    pooled_output = jnp.tanh(cls @ packed["pooler_w"] + packed["pooler_b"])
    return sequence_output, pooled_output


# ----------------------------------- main ------------------------------------

if __name__ == "__main__":
    cfg = Config()
    B, S = 2, 8

    key = jax.random.PRNGKey(0)
    k_param, k_ids, k_type = jax.random.split(key, 3)

    params = init_params(cfg, k_param)
    packed = pack_params(params, cfg)

    input_ids = jax.random.randint(k_ids, (B, S), 0, cfg.vocab_size, jnp.int32)
    token_type_ids = jax.random.randint(k_type, (B, S), 0, cfg.type_vocab_size,
                                        jnp.int32)
    attention_mask = jnp.ones((B, S), jnp.int32).at[1, 6:].set(0)  # ragged mask

    fwd = jax.jit(functools.partial(encoder_forward, packed, cfg))
    seq_out, pooled_out = fwd(input_ids, token_type_ids, attention_mask)
    jax.block_until_ready((seq_out, pooled_out))

    assert seq_out.shape == (B, S, cfg.hidden_size)
    assert pooled_out.shape == (B, cfg.hidden_size)
    assert bool(jnp.all(jnp.isfinite(seq_out))) and bool(jnp.all(jnp.isfinite(pooled_out)))
    print("KERNEL_OK")
</pallas_src>

<mosaic_0001>
module attributes {stable_mosaic.version = 11 : i64} {
  func.func @_encoder_kernel(%arg0: i32, %arg1: memref<16x32xf32, #tpu.memory_space<vmem>>, %arg2: memref<2x1x8xf32, #tpu.memory_space<vmem>>, %arg3: memref<1x32xf32, #tpu.memory_space<vmem>>, %arg4: memref<1x32xf32, #tpu.memory_space<vmem>>, %arg5: memref<1x32x96xbf16, #tpu.memory_space<vmem>>, %arg6: memref<1x1x96xf32, #tpu.memory_space<vmem>>, %arg7: memref<1x32x32xbf16, #tpu.memory_space<vmem>>, %arg8: memref<1x1x32xf32, #tpu.memory_space<vmem>>, %arg9: memref<1x1x32xf32, #tpu.memory_space<vmem>>, %arg10: memref<1x1x32xf32, #tpu.memory_space<vmem>>, %arg11: memref<1x32x64xbf16, #tpu.memory_space<vmem>>, %arg12: memref<1x1x64xf32, #tpu.memory_space<vmem>>, %arg13: memref<1x64x32xbf16, #tpu.memory_space<vmem>>, %arg14: memref<1x1x32xf32, #tpu.memory_space<vmem>>, %arg15: memref<1x1x32xf32, #tpu.memory_space<vmem>>, %arg16: memref<1x1x32xf32, #tpu.memory_space<vmem>>, %arg17: memref<16x32xf32, #tpu.memory_space<vmem>>, %arg18: memref<16x32xf32, #tpu.memory_space<vmem>>) attributes {dimension_semantics = [#tpu.dimension_semantics<arbitrary>], iteration_bounds = array<i64: 2>, scalar_prefetch = 0 : i64, scratch_operands = 1 : i64, tpu.core_type = #tpu.core_type<tc>, window_params = [{pipeline_mode = #tpu.pipeline_mode<synchronous>, transform_indices = @transform_0, window_bounds = array<i64: 16, 32>}, {pipeline_mode = #tpu.pipeline_mode<synchronous>, transform_indices = @transform_1, window_bounds = array<i64: 2, 1, 8>}, {pipeline_mode = #tpu.pipeline_mode<synchronous>, transform_indices = @transform_2, window_bounds = array<i64: 1, 32>}, {pipeline_mode = #tpu.pipeline_mode<synchronous>, transform_indices = @transform_3, window_bounds = array<i64: 1, 32>}, {transform_indices = @transform_4, window_bounds = array<i64: 1, 32, 96>}, {transform_indices = @transform_5, window_bounds = array<i64: 1, 1, 96>}, {transform_indices = @transform_6, window_bounds = array<i64: 1, 32, 32>}, {transform_indices = @transform_7, window_bounds = array<i64: 1, 1, 32>}, {transform_indices = @transform_8, window_bounds = array<i64: 1, 1, 32>}, {transform_indices = @transform_9, window_bounds = array<i64: 1, 1, 32>}, {transform_indices = @transform_10, window_bounds = array<i64: 1, 32, 64>}, {transform_indices = @transform_11, window_bounds = array<i64: 1, 1, 64>}, {transform_indices = @transform_12, window_bounds = array<i64: 1, 64, 32>}, {transform_indices = @transform_13, window_bounds = array<i64: 1, 1, 32>}, {transform_indices = @transform_14, window_bounds = array<i64: 1, 1, 32>}, {transform_indices = @transform_15, window_bounds = array<i64: 1, 1, 32>}, {pipeline_mode = #tpu.pipeline_mode<synchronous>, transform_indices = @transform_16, window_bounds = array<i64: 16, 32>}]} {
    %c0_i32 = arith.constant 0 : i32
    %0 = arith.cmpi eq, %arg0, %c0_i32 : i32
    %1 = arith.extui %0 : i1 to i32
    %c0_i32_0 = arith.constant 0 : i32
    %2 = arith.cmpi ne, %1, %c0_i32_0 : i32
    scf.if %2 {
      %c0_84 = arith.constant 0 : index
      %c0_85 = arith.constant 0 : index
      %226 = vector.load %arg1[%c0_84, %c0_85] : memref<16x32xf32, #tpu.memory_space<vmem>>, vector<16x32xf32>
      %c0_86 = arith.constant 0 : index
      %c0_87 = arith.constant 0 : index
      %227 = vector.load %arg3[%c0_86, %c0_87] : memref<1x32xf32, #tpu.memory_space<vmem>>, vector<1x32xf32>
      %c0_88 = arith.constant 0 : index
      %c0_89 = arith.constant 0 : index
      %228 = vector.load %arg4[%c0_88, %c0_89] : memref<1x32xf32, #tpu.memory_space<vmem>>, vector<1x32xf32>
      %cst_90 = arith.constant dense<0.000000e+00> : vector<16xf32>
      %229 = vector.multi_reduction <add>, %226, %cst_90 [1] : vector<16x32xf32> to vector<16xf32>
      %230 = vector.shape_cast %229 : vector<16xf32> to vector<16x1xf32>
      %cst_91 = arith.constant 3.200000e+01 : f32
      %231 = vector.broadcast %cst_91 : f32 to vector<16x1xf32>
      %232 = arith.divf %230, %231 : vector<16x1xf32>
      %233 = vector.broadcast %232 : vector<16x1xf32> to vector<16x32xf32>
      %234 = arith.subf %226, %233 : vector<16x32xf32>
      %235 = arith.mulf %234, %234 : vector<16x32xf32>
      %cst_92 = arith.constant dense<0.000000e+00> : vector<16xf32>
      %236 = vector.multi_reduction <add>, %235, %cst_92 [1] : vector<16x32xf32> to vector<16xf32>
      %237 = vector.shape_cast %236 : vector<16xf32> to vector<16x1xf32>
      %cst_93 = arith.constant 3.200000e+01 : f32
      %238 = vector.broadcast %cst_93 : f32 to vector<16x1xf32>
      %239 = arith.divf %237, %238 : vector<16x1xf32>
      %240 = vector.broadcast %232 : vector<16x1xf32> to vector<16x32xf32>
      %241 = arith.subf %226, %240 : vector<16x32xf32>
      %cst_94 = arith.constant 9.99999996E-13 : f32
      %242 = vector.broadcast %cst_94 : f32 to vector<16x1xf32>
      %243 = arith.addf %239, %242 : vector<16x1xf32>
      %244 = math.rsqrt %243 : vector<16x1xf32>
      %245 = vector.broadcast %244 : vector<16x1xf32> to vector<16x32xf32>
      %246 = arith.mulf %241, %245 : vector<16x32xf32>
      %247 = vector.broadcast %227 : vector<1x32xf32> to vector<16x32xf32>
      %248 = arith.mulf %246, %247 : vector<16x32xf32>
      %249 = vector.broadcast %228 : vector<1x32xf32> to vector<16x32xf32>
      %250 = arith.addf %248, %249 : vector<16x32xf32>
      %c0_95 = arith.constant 0 : index
      %c0_96 = arith.constant 0 : index
      %251 = vector.load %arg18[%c0_95, %c0_96] : memref<16x32xf32, #tpu.memory_space<vmem>>, vector<16x32xf32>
      tpu.vector_store %arg18[%c0_95, %c0_96], %250 {strides = array<i32>} : memref<16x32xf32, #tpu.memory_space<vmem>>, vector<16x32xf32>,
    } else {
    }
    %c0 = arith.constant 0 : index
    %c0_1 = arith.constant 0 : index
    %3 = vector.load %arg18[%c0, %c0_1] : memref<16x32xf32, #tpu.memory_space<vmem>>, vector<16x32xf32>
    %4 = arith.truncf %3 : vector<16x32xf32> to vector<16x32xbf16>
    %c0_2 = arith.constant 0 : index
    %c0_3 = arith.constant 0 : index
    %c0_4 = arith.constant 0 : index
    %5 = vector.load %arg5[%c0_2, %c0_3, %c0_4] : memref<1x32x96xbf16, #tpu.memory_space<vmem>>, vector<1x32x96xbf16>
    %6 = vector.shape_cast %5 : vector<1x32x96xbf16> to vector<32x96xbf16>
    %cst = arith.constant dense<0.000000e+00> : vector<16x96xf32>
    %7 = tpu.matmul %4, %6, %cst {dimension_numbers = #tpu.dot_dimension_numbers<[1], [0], [0], [1], [0, 0, 1, 1], [], []>} : vector<16x32xbf16>, vector<32x96xbf16>, vector<16x96xf32> -> vector<16x96xf32>
    %c0_5 = arith.constant 0 : index
    %c0_6 = arith.constant 0 : index
    %c0_7 = arith.constant 0 : index
    %8 = vector.load %arg6[%c0_5, %c0_6, %c0_7] : memref<1x1x96xf32, #tpu.memory_space<vmem>>, vector<1x1x96xf32>
    %9 = vector.shape_cast %8 : vector<1x1x96xf32> to vector<1x96xf32>
    %10 = vector.broadcast %9 : vector<1x96xf32> to vector<16x96xf32>
    %11 = arith.addf %7, %10 : vector<16x96xf32>
    %c0_8 = arith.constant 0 : index
    %c0_9 = arith.constant 0 : index
    %c0_10 = arith.constant 0 : index
    %12 = vector.load %arg2[%c0_8, %c0_9, %c0_10] : memref<2x1x8xf32, #tpu.memory_space<vmem>>, vector<2x1x8xf32>
    %c0_11 = arith.constant 0 : index
    %c0_12 = arith.constant 0 : index
    %c0_13 = arith.constant 0 : index
    %13 = vector.load %arg7[%c0_11, %c0_12, %c0_13] : memref<1x32x32xbf16, #tpu.memory_space<vmem>>, vector<1x32x32xbf16>
    %14 = vector.shape_cast %13 : vector<1x32x32xbf16> to vector<32x32xbf16>
    %cst_14 = arith.constant 0.000000e+00 : f32
    %15 = vector.broadcast %cst_14 : f32 to vector<16x32xf32>
    %c0_15 = arith.constant 0 : index
    %c0_16 = arith.constant 0 : index
    %c0_17 = arith.constant 0 : index
    %16 = vector.load %arg8[%c0_15, %c0_16, %c0_17] : memref<1x1x32xf32, #tpu.memory_space<vmem>>, vector<1x1x32xf32>
    %17 = vector.shape_cast %16 : vector<1x1x32xf32> to vector<1x32xf32>
    %18 = vector.broadcast %17 : vector<1x32xf32> to vector<16x32xf32>
    %19 = arith.addf %15, %18 : vector<16x32xf32>
    %20 = vector.extract_strided_slice %11 {offsets = [0, 0], sizes = [16, 8], strides = [1, 1]} : vector<16x96xf32> to vector<16x8xf32>
    %21 = vector.shape_cast %20 : vector<16x8xf32> to vector<2x8x8xf32>
    %22 = vector.extract_strided_slice %11 {offsets = [0, 32], sizes = [16, 8], strides = [1, 1]} : vector<16x96xf32> to vector<16x8xf32>
    %23 = vector.shape_cast %22 : vector<16x8xf32> to vector<2x8x8xf32>
    %24 = vector.extract_strided_slice %11 {offsets = [0, 64], sizes = [16, 8], strides = [1, 1]} : vector<16x96xf32> to vector<16x8xf32>
    %25 = vector.shape_cast %24 : vector<16x8xf32> to vector<2x8x8xf32>
    %26 = arith.truncf %21 : vector<2x8x8xf32> to vector<2x8x8xbf16>
    %27 = arith.truncf %23 : vector<2x8x8xf32> to vector<2x8x8xbf16>
    "tpu.trace_start"() <{level = 10 : i32, message = "bqd,bkd->bqk"}> : () -> ()
    %cst_18 = arith.constant dense<0.000000e+00> : vector<2x8x8xf32>
    %28 = tpu.matmul %26, %27, %cst_18 {dimension_numbers = #tpu.dot_dimension_numbers<[2], [2], [1], [1], [0, 0, 0, 1, 1, 1], [0], [0]>} : vector<2x8x8xbf16>, vector<2x8x8xbf16>, vector<2x8x8xf32> -> vector<2x8x8xf32>
    "tpu.trace_stop"() : () -> ()
    %cst_19 = arith.constant 0.353553385 : f32
    %29 = vector.broadcast %cst_19 : f32 to vector<2x8x8xf32>
    %30 = arith.mulf %28, %29 : vector<2x8x8xf32>
    %31 = vector.broadcast %12 : vector<2x1x8xf32> to vector<2x8x8xf32>
    %32 = arith.addf %30, %31 : vector<2x8x8xf32>
    %cst_20 = arith.constant dense<0xFF800000> : vector<2x8xf32>
    %33 = vector.multi_reduction <maximumf>, %32, %cst_20 [2] : vector<2x8x8xf32> to vector<2x8xf32>
    %34 = vector.shape_cast %33 : vector<2x8xf32> to vector<2x8x1xf32>
    %35 = vector.broadcast %34 : vector<2x8x1xf32> to vector<2x8x8xf32>
    %36 = arith.subf %32, %35 : vector<2x8x8xf32>
    %37 = math.exp %36 : vector<2x8x8xf32>
    %cst_21 = arith.constant dense<0.000000e+00> : vector<2x8xf32>
    %38 = vector.multi_reduction <add>, %37, %cst_21 [2] : vector<2x8x8xf32> to vector<2x8xf32>
    %39 = vector.shape_cast %38 : vector<2x8xf32> to vector<2x8x1xf32>
    %40 = tpu.reciprocal %39 {approx = true} : vector<2x8x1xf32> -> vector<2x8x1xf32>
    %41 = vector.broadcast %40 : vector<2x8x1xf32> to vector<2x8x8xf32>
    %42 = arith.mulf %37, %41 : vector<2x8x8xf32>
    %43 = arith.truncf %42 : vector<2x8x8xf32> to vector<2x8x8xbf16>
    %44 = arith.truncf %25 : vector<2x8x8xf32> to vector<2x8x8xbf16>
    "tpu.trace_start"() <{level = 10 : i32, message = "bqk,bkd->bqd"}> : () -> ()
    %cst_22 = arith.constant dense<0.000000e+00> : vector<2x8x8xf32>
    %45 = tpu.matmul %43, %44, %cst_22 {dimension_numbers = #tpu.dot_dimension_numbers<[2], [1], [1], [2], [0, 0, 0, 1, 1, 2], [0], [0]>} : vector<2x8x8xbf16>, vector<2x8x8xbf16>, vector<2x8x8xf32> -> vector<2x8x8xf32>
    "tpu.trace_stop"() : () -> ()
    %46 = vector.shape_cast %45 : vector<2x8x8xf32> to vector<16x8xf32>
    %47 = arith.truncf %46 : vector<16x8xf32> to vector<16x8xbf16>
    %48 = vector.extract_strided_slice %14 {offsets = [0, 0], sizes = [8, 32], strides = [1, 1]} : vector<32x32xbf16> to vector<8x32xbf16>
    %cst_23 = arith.constant dense<0.000000e+00> : vector<16x32xf32>
    %49 = tpu.matmul %47, %48, %cst_23 {dimension_numbers = #tpu.dot_dimension_numbers<[1], [0], [0], [1], [0, 0, 1, 1], [], []>} : vector<16x8xbf16>, vector<8x32xbf16>, vector<16x32xf32> -> vector<16x32xf32>
    %50 = arith.addf %19, %49 : vector<16x32xf32>
    %51 = vector.extract_strided_slice %11 {offsets = [0, 8], sizes = [16, 8], strides = [1, 1]} : vector<16x96xf32> to vector<16x8xf32>
    %52 = vector.shape_cast %51 : vector<16x8xf32> to vector<2x8x8xf32>
    %53 = vector.extract_strided_slice %11 {offsets = [0, 40], sizes = [16, 8], strides = [1, 1]} : vector<16x96xf32> to vector<16x8xf32>
    %54 = vector.shape_cast %53 : vector<16x8xf32> to vector<2x8x8xf32>
    %55 = vector.extract_strided_slice %11 {offsets = [0, 72], sizes = [16, 8], strides = [1, 1]} : vector<16x96xf32> to vector<16x8xf32>
    %56 = vector.shape_cast %55 : vector<16x8xf32> to vector<2x8x8xf32>
    %57 = arith.truncf %52 : vector<2x8x8xf32> to vector<2x8x8xbf16>
    %58 = arith.truncf %54 : vector<2x8x8xf32> to vector<2x8x8xbf16>
    "tpu.trace_start"() <{level = 10 : i32, message = "bqd,bkd->bqk"}> : () -> ()
    %cst_24 = arith.constant dense<0.000000e+00> : vector<2x8x8xf32>
    %59 = tpu.matmul %57, %58, %cst_24 {dimension_numbers = #tpu.dot_dimension_numbers<[2], [2], [1], [1], [0, 0, 0, 1, 1, 1], [0], [0]>} : vector<2x8x8xbf16>, vector<2x8x8xbf16>, vector<2x8x8xf32> -> vector<2x8x8xf32>
    "tpu.trace_stop"() : () -> ()
    %cst_25 = arith.constant 0.353553385 : f32
    %60 = vector.broadcast %cst_25 : f32 to vector<2x8x8xf32>
    %61 = arith.mulf %59, %60 : vector<2x8x8xf32>
    %62 = vector.broadcast %12 : vector<2x1x8xf32> to vector<2x8x8xf32>
    %63 = arith.addf %61, %62 : vector<2x8x8xf32>
    %cst_26 = arith.constant dense<0xFF800000> : vector<2x8xf32>
    %64 = vector.multi_reduction <maximumf>, %63, %cst_26 [2] : vector<2x8x8xf32> to vector<2x8xf32>
    %65 = vector.shape_cast %64 : vector<2x8xf32> to vector<2x8x1xf32>
    %66 = vector.broadcast %65 : vector<2x8x1xf32> to vector<2x8x8xf32>
    %67 = arith.subf %63, %66 : vector<2x8x8xf32>
    %68 = math.exp %67 : vector<2x8x8xf32>
    %cst_27 = arith.constant dense<0.000000e+00> : vector<2x8xf32>
    %69 = vector.multi_reduction <add>, %68, %cst_27 [2] : vector<2x8x8xf32> to vector<2x8xf32>
    %70 = vector.shape_cast %69 : vector<2x8xf32> to vector<2x8x1xf32>
    %71 = tpu.reciprocal %70 {approx = true} : vector<2x8x1xf32> -> vector<2x8x1xf32>
    %72 = vector.broadcast %71 : vector<2x8x1xf32> to vector<2x8x8xf32>
    %73 = arith.mulf %68, %72 : vector<2x8x8xf32>
    %74 = arith.truncf %73 : vector<2x8x8xf32> to vector<2x8x8xbf16>
    %75 = arith.truncf %56 : vector<2x8x8xf32> to vector<2x8x8xbf16>
    "tpu.trace_start"() <{level = 10 : i32, message = "bqk,bkd->bqd"}> : () -> ()
    %cst_28 = arith.constant dense<0.000000e+00> : vector<2x8x8xf32>
    %76 = tpu.matmul %74, %75, %cst_28 {dimension_numbers = #tpu.dot_dimension_numbers<[2], [1], [1], [2], [0, 0, 0, 1, 1, 2], [0], [0]>} : vector<2x8x8xbf16>, vector<2x8x8xbf16>, vector<2x8x8xf32> -> vector<2x8x8xf32>
    "tpu.trace_stop"() : () -> ()
    %77 = vector.shape_cast %76 : vector<2x8x8xf32> to vector<16x8xf32>
    %78 = arith.truncf %77 : vector<16x8xf32> to vector<16x8xbf16>
    %79 = vector.extract_strided_slice %14 {offsets = [8, 0], sizes = [8, 32], strides = [1, 1]} : vector<32x32xbf16> to vector<8x32xbf16>
    %cst_29 = arith.constant dense<0.000000e+00> : vector<16x32xf32>
    %80 = tpu.matmul %78, %79, %cst_29 {dimension_numbers = #tpu.dot_dimension_numbers<[1], [0], [0], [1], [0, 0, 1, 1], [], []>} : vector<16x8xbf16>, vector<8x32xbf16>, vector<16x32xf32> -> vector<16x32xf32>
    %81 = arith.addf %50, %80 : vector<16x32xf32>
    %82 = vector.extract_strided_slice %11 {offsets = [0, 16], sizes = [16, 8], strides = [1, 1]} : vector<16x96xf32> to vector<16x8xf32>
    %83 = vector.shape_cast %82 : vector<16x8xf32> to vector<2x8x8xf32>
    %84 = vector.extract_strided_slice %11 {offsets = [0, 48], sizes = [16, 8], strides = [1, 1]} : vector<16x96xf32> to vector<16x8xf32>
    %85 = vector.shape_cast %84 : vector<16x8xf32> to vector<2x8x8xf32>
    %86 = vector.extract_strided_slice %11 {offsets = [0, 80], sizes = [16, 8], strides = [1, 1]} : vector<16x96xf32> to vector<16x8xf32>
    %87 = vector.shape_cast %86 : vector<16x8xf32> to vector<2x8x8xf32>
    %88 = arith.truncf %83 : vector<2x8x8xf32> to vector<2x8x8xbf16>
    %89 = arith.truncf %85 : vector<2x8x8xf32> to vector<2x8x8xbf16>
    "tpu.trace_start"() <{level = 10 : i32, message = "bqd,bkd->bqk"}> : () -> ()
    %cst_30 = arith.constant dense<0.000000e+00> : vector<2x8x8xf32>
    %90 = tpu.matmul %88, %89, %cst_30 {dimension_numbers = #tpu.dot_dimension_numbers<[2], [2], [1], [1], [0, 0, 0, 1, 1, 1], [0], [0]>} : vector<2x8x8xbf16>, vector<2x8x8xbf16>, vector<2x8x8xf32> -> vector<2x8x8xf32>
    "tpu.trace_stop"() : () -> ()
    %cst_31 = arith.constant 0.353553385 : f32
    %91 = vector.broadcast %cst_31 : f32 to vector<2x8x8xf32>
    %92 = arith.mulf %90, %91 : vector<2x8x8xf32>
    %93 = vector.broadcast %12 : vector<2x1x8xf32> to vector<2x8x8xf32>
    %94 = arith.addf %92, %93 : vector<2x8x8xf32>
    %cst_32 = arith.constant dense<0xFF800000> : vector<2x8xf32>
    %95 = vector.multi_reduction <maximumf>, %94, %cst_32 [2] : vector<2x8x8xf32> to vector<2x8xf32>
    %96 = vector.shape_cast %95 : vector<2x8xf32> to vector<2x8x1xf32>
    %97 = vector.broadcast %96 : vector<2x8x1xf32> to vector<2x8x8xf32>
    %98 = arith.subf %94, %97 : vector<2x8x8xf32>
    %99 = math.exp %98 : vector<2x8x8xf32>
    %cst_33 = arith.constant dense<0.000000e+00> : vector<2x8xf32>
    %100 = vector.multi_reduction <add>, %99, %cst_33 [2] : vector<2x8x8xf32> to vector<2x8xf32>
    %101 = vector.shape_cast %100 : vector<2x8xf32> to vector<2x8x1xf32>
    %102 = tpu.reciprocal %101 {approx = true} : vector<2x8x1xf32> -> vector<2x8x1xf32>
    %103 = vector.broadcast %102 : vector<2x8x1xf32> to vector<2x8x8xf32>
    %104 = arith.mulf %99, %103 : vector<2x8x8xf32>
    %105 = arith.truncf %104 : vector<2x8x8xf32> to vector<2x8x8xbf16>
    %106 = arith.truncf %87 : vector<2x8x8xf32> to vector<2x8x8xbf16>
    "tpu.trace_start"() <{level = 10 : i32, message = "bqk,bkd->bqd"}> : () -> ()
    %cst_34 = arith.constant dense<0.000000e+00> : vector<2x8x8xf32>
    %107 = tpu.matmul %105, %106, %cst_34 {dimension_numbers = #tpu.dot_dimension_numbers<[2], [1], [1], [2], [0, 0, 0, 1, 1, 2], [0], [0]>} : vector<2x8x8xbf16>, vector<2x8x8xbf16>, vector<2x8x8xf32> -> vector<2x8x8xf32>
    "tpu.trace_stop"() : () -> ()
    %108 = vector.shape_cast %107 : vector<2x8x8xf32> to vector<16x8xf32>
    %109 = arith.truncf %108 : vector<16x8xf32> to vector<16x8xbf16>
    %110 = vector.extract_strided_slice %14 {offsets = [16, 0], sizes = [8, 32], strides = [1, 1]} : vector<32x32xbf16> to vector<8x32xbf16>
    %cst_35 = arith.constant dense<0.000000e+00> : vector<16x32xf32>
    %111 = tpu.matmul %109, %110, %cst_35 {dimension_numbers = #tpu.dot_dimension_numbers<[1], [0], [0], [1], [0, 0, 1, 1], [], []>} : vector<16x8xbf16>, vector<8x32xbf16>, vector<16x32xf32> -> vector<16x32xf32>
    %112 = arith.addf %81, %111 : vector<16x32xf32>
    %113 = vector.extract_strided_slice %11 {offsets = [0, 24], sizes = [16, 8], strides = [1, 1]} : vector<16x96xf32> to vector<16x8xf32>
    %114 = vector.shape_cast %113 : vector<16x8xf32> to vector<2x8x8xf32>
    %115 = vector.extract_strided_slice %11 {offsets = [0, 56], sizes = [16, 8], strides = [1, 1]} : vector<16x96xf32> to vector<16x8xf32>
    %116 = vector.shape_cast %115 : vector<16x8xf32> to vector<2x8x8xf32>
    %117 = vector.extract_strided_slice %11 {offsets = [0, 88], sizes = [16, 8], strides = [1, 1]} : vector<16x96xf32> to vector<16x8xf32>
    %118 = vector.shape_cast %117 : vector<16x8xf32> to vector<2x8x8xf32>
    %119 = arith.truncf %114 : vector<2x8x8xf32> to vector<2x8x8xbf16>
    %120 = arith.truncf %116 : vector<2x8x8xf32> to vector<2x8x8xbf16>
    "tpu.trace_start"() <{level = 10 : i32, message = "bqd,bkd->bqk"}> : () -> ()
    %cst_36 = arith.constant dense<0.000000e+00> : vector<2x8x8xf32>
    %121 = tpu.matmul %119, %120, %cst_36 {dimension_numbers = #tpu.dot_dimension_numbers<[2], [2], [1], [1], [0, 0, 0, 1, 1, 1], [0], [0]>} : vector<2x8x8xbf16>, vector<2x8x8xbf16>, vector<2x8x8xf32> -> vector<2x8x8xf32>
    "tpu.trace_stop"() : () -> ()
    %cst_37 = arith.constant 0.353553385 : f32
    %122 = vector.broadcast %cst_37 : f32 to vector<2x8x8xf32>
    %123 = arith.mulf %121, %122 : vector<2x8x8xf32>
    %124 = vector.broadcast %12 : vector<2x1x8xf32> to vector<2x8x8xf32>
    %125 = arith.addf %123, %124 : vector<2x8x8xf32>
    %cst_38 = arith.constant dense<0xFF800000> : vector<2x8xf32>
    %126 = vector.multi_reduction <maximumf>, %125, %cst_38 [2] : vector<2x8x8xf32> to vector<2x8xf32>
    %127 = vector.shape_cast %126 : vector<2x8xf32> to vector<2x8x1xf32>
    %128 = vector.broadcast %127 : vector<2x8x1xf32> to vector<2x8x8xf32>
    %129 = arith.subf %125, %128 : vector<2x8x8xf32>
    %130 = math.exp %129 : vector<2x8x8xf32>
    %cst_39 = arith.constant dense<0.000000e+00> : vector<2x8xf32>
    %131 = vector.multi_reduction <add>, %130, %cst_39 [2] : vector<2x8x8xf32> to vector<2x8xf32>
    %132 = vector.shape_cast %131 : vector<2x8xf32> to vector<2x8x1xf32>
    %133 = tpu.reciprocal %132 {approx = true} : vector<2x8x1xf32> -> vector<2x8x1xf32>
    %134 = vector.broadcast %133 : vector<2x8x1xf32> to vector<2x8x8xf32>
    %135 = arith.mulf %130, %134 : vector<2x8x8xf32>
    %136 = arith.truncf %135 : vector<2x8x8xf32> to vector<2x8x8xbf16>
    %137 = arith.truncf %118 : vector<2x8x8xf32> to vector<2x8x8xbf16>
    "tpu.trace_start"() <{level = 10 : i32, message = "bqk,bkd->bqd"}> : () -> ()
    %cst_40 = arith.constant dense<0.000000e+00> : vector<2x8x8xf32>
    %138 = tpu.matmul %136, %137, %cst_40 {dimension_numbers = #tpu.dot_dimension_numbers<[2], [1], [1], [2], [0, 0, 0, 1, 1, 2], [0], [0]>} : vector<2x8x8xbf16>, vector<2x8x8xbf16>, vector<2x8x8xf32> -> vector<2x8x8xf32>
    "tpu.trace_stop"() : () -> ()
    %139 = vector.shape_cast %138 : vector<2x8x8xf32> to vector<16x8xf32>
    %140 = arith.truncf %139 : vector<16x8xf32> to vector<16x8xbf16>
    %141 = vector.extract_strided_slice %14 {offsets = [24, 0], sizes = [8, 32], strides = [1, 1]} : vector<32x32xbf16> to vector<8x32xbf16>
    %cst_41 = arith.constant dense<0.000000e+00> : vector<16x32xf32>
    %142 = tpu.matmul %140, %141, %cst_41 {dimension_numbers = #tpu.dot_dimension_numbers<[1], [0], [0], [1], [0, 0, 1, 1], [], []>} : vector<16x8xbf16>, vector<8x32xbf16>, vector<16x32xf32> -> vector<16x32xf32>
    %143 = arith.addf %112, %142 : vector<16x32xf32>
    %144 = arith.addf %3, %143 : vector<16x32xf32>
    %c0_42 = arith.constant 0 : index
    %c0_43 = arith.constant 0 : index
    %c0_44 = arith.constant 0 : index
    %145 = vector.load %arg9[%c0_42, %c0_43, %c0_44] : memref<1x1x32xf32, #tpu.memory_space<vmem>>, vector<1x1x32xf32>
    %146 = vector.shape_cast %145 : vector<1x1x32xf32> to vector<1x32xf32>
    %c0_45 = arith.constant 0 : index
    %c0_46 = arith.constant 0 : index
    %c0_47 = arith.constant 0 : index
    %147 = vector.load %arg10[%c0_45, %c0_46, %c0_47] : memref<1x1x32xf32, #tpu.memory_space<vmem>>, vector<1x1x32xf32>
    %148 = vector.shape_cast %147 : vector<1x1x32xf32> to vector<1x32xf32>
    %cst_48 = arith.constant dense<0.000000e+00> : vector<16xf32>
    %149 = vector.multi_reduction <add>, %144, %cst_48 [1] : vector<16x32xf32> to vector<16xf32>
    %150 = vector.shape_cast %149 : vector<16xf32> to vector<16x1xf32>
    %cst_49 = arith.constant 3.200000e+01 : f32
    %151 = vector.broadcast %cst_49 : f32 to vector<16x1xf32>
    %152 = arith.divf %150, %151 : vector<16x1xf32>
    %153 = vector.broadcast %152 : vector<16x1xf32> to vector<16x32xf32>
    %154 = arith.subf %144, %153 : vector<16x32xf32>
    %155 = arith.mulf %154, %154 : vector<16x32xf32>
    %cst_50 = arith.constant dense<0.000000e+00> : vector<16xf32>
    %156 = vector.multi_reduction <add>, %155, %cst_50 [1] : vector<16x32xf32> to vector<16xf32>
    %157 = vector.shape_cast %156 : vector<16xf32> to vector<16x1xf32>
    %cst_51 = arith.constant 3.200000e+01 : f32
    %158 = vector.broadcast %cst_51 : f32 to vector<16x1xf32>
    %159 = arith.divf %157, %158 : vector<16x1xf32>
    %160 = vector.broadcast %152 : vector<16x1xf32> to vector<16x32xf32>
    %161 = arith.subf %144, %160 : vector<16x32xf32>
    %cst_52 = arith.constant 9.99999996E-13 : f32
    %162 = vector.broadcast %cst_52 : f32 to vector<16x1xf32>
    %163 = arith.addf %159, %162 : vector<16x1xf32>
    %164 = math.rsqrt %163 : vector<16x1xf32>
    %165 = vector.broadcast %164 : vector<16x1xf32> to vector<16x32xf32>
    %166 = arith.mulf %161, %165 : vector<16x32xf32>
    %167 = vector.broadcast %146 : vector<1x32xf32> to vector<16x32xf32>
    %168 = arith.mulf %166, %167 : vector<16x32xf32>
    %169 = vector.broadcast %148 : vector<1x32xf32> to vector<16x32xf32>
    %170 = arith.addf %168, %169 : vector<16x32xf32>
    %171 = arith.truncf %170 : vector<16x32xf32> to vector<16x32xbf16>
    %c0_53 = arith.constant 0 : index
    %c0_54 = arith.constant 0 : index
    %c0_55 = arith.constant 0 : index
    %172 = vector.load %arg11[%c0_53, %c0_54, %c0_55] : memref<1x32x64xbf16, #tpu.memory_space<vmem>>, vector<1x32x64xbf16>
    %173 = vector.shape_cast %172 : vector<1x32x64xbf16> to vector<32x64xbf16>
    %cst_56 = arith.constant dense<0.000000e+00> : vector<16x64xf32>
    %174 = tpu.matmul %171, %173, %cst_56 {dimension_numbers = #tpu.dot_dimension_numbers<[1], [0], [0], [1], [0, 0, 1, 1], [], []>} : vector<16x32xbf16>, vector<32x64xbf16>, vector<16x64xf32> -> vector<16x64xf32>
    %c0_57 = arith.constant 0 : index
    %c0_58 = arith.constant 0 : index
    %c0_59 = arith.constant 0 : index
    %175 = vector.load %arg12[%c0_57, %c0_58, %c0_59] : memref<1x1x64xf32, #tpu.memory_space<vmem>>, vector<1x1x64xf32>
    %176 = vector.shape_cast %175 : vector<1x1x64xf32> to vector<1x64xf32>
    %177 = vector.broadcast %176 : vector<1x64xf32> to vector<16x64xf32>
    %178 = arith.addf %174, %177 : vector<16x64xf32>
    %cst_60 = arith.constant 5.000000e-01 : f32
    %179 = vector.broadcast %cst_60 : f32 to vector<16x64xf32>
    %180 = arith.mulf %179, %178 : vector<16x64xf32>
    %cst_61 = arith.constant 0.707106769 : f32
    %181 = vector.broadcast %cst_61 : f32 to vector<16x64xf32>
    %182 = arith.mulf %178, %181 : vector<16x64xf32>
    %183 = math.erf %182 : vector<16x64xf32>
    %cst_62 = arith.constant 1.000000e+00 : f32
    %184 = vector.broadcast %cst_62 : f32 to vector<16x64xf32>
    %185 = arith.addf %184, %183 : vector<16x64xf32>
    %186 = arith.mulf %180, %185 : vector<16x64xf32>
    %187 = arith.truncf %186 : vector<16x64xf32> to vector<16x64xbf16>
    %c0_63 = arith.constant 0 : index
    %c0_64 = arith.constant 0 : index
    %c0_65 = arith.constant 0 : index
    %188 = vector.load %arg13[%c0_63, %c0_64, %c0_65] : memref<1x64x32xbf16, #tpu.memory_space<vmem>>, vector<1x64x32xbf16>
    %189 = vector.shape_cast %188 : vector<1x64x32xbf16> to vector<64x32xbf16>
    %cst_66 = arith.constant dense<0.000000e+00> : vector<16x32xf32>
    %190 = tpu.matmul %187, %189, %cst_66 {dimension_numbers = #tpu.dot_dimension_numbers<[1], [0], [0], [1], [0, 0, 1, 1], [], []>} : vector<16x64xbf16>, vector<64x32xbf16>, vector<16x32xf32> -> vector<16x32xf32>
    %c0_67 = arith.constant 0 : index
    %c0_68 = arith.constant 0 : index
    %c0_69 = arith.constant 0 : index
    %191 = vector.load %arg14[%c0_67, %c0_68, %c0_69] : memref<1x1x32xf32, #tpu.memory_space<vmem>>, vector<1x1x32xf32>
    %192 = vector.shape_cast %191 : vector<1x1x32xf32> to vector<1x32xf32>
    %193 = vector.broadcast %192 : vector<1x32xf32> to vector<16x32xf32>
    %194 = arith.addf %190, %193 : vector<16x32xf32>
    %195 = arith.addf %170, %194 : vector<16x32xf32>
    %c0_70 = arith.constant 0 : index
    %c0_71 = arith.constant 0 : index
    %c0_72 = arith.constant 0 : index
    %196 = vector.load %arg15[%c0_70, %c0_71, %c0_72] : memref<1x1x32xf32, #tpu.memory_space<vmem>>, vector<1x1x32xf32>
    %197 = vector.shape_cast %196 : vector<1x1x32xf32> to vector<1x32xf32>
    %c0_73 = arith.constant 0 : index
    %c0_74 = arith.constant 0 : index
    %c0_75 = arith.constant 0 : index
    %198 = vector.load %arg16[%c0_73, %c0_74, %c0_75] : memref<1x1x32xf32, #tpu.memory_space<vmem>>, vector<1x1x32xf32>
    %199 = vector.shape_cast %198 : vector<1x1x32xf32> to vector<1x32xf32>
    %cst_76 = arith.constant dense<0.000000e+00> : vector<16xf32>
    %200 = vector.multi_reduction <add>, %195, %cst_76 [1] : vector<16x32xf32> to vector<16xf32>
    %201 = vector.shape_cast %200 : vector<16xf32> to vector<16x1xf32>
    %cst_77 = arith.constant 3.200000e+01 : f32
    %202 = vector.broadcast %cst_77 : f32 to vector<16x1xf32>
    %203 = arith.divf %201, %202 : vector<16x1xf32>
    %204 = vector.broadcast %203 : vector<16x1xf32> to vector<16x32xf32>
    %205 = arith.subf %195, %204 : vector<16x32xf32>
    %206 = arith.mulf %205, %205 : vector<16x32xf32>
    %cst_78 = arith.constant dense<0.000000e+00> : vector<16xf32>
    %207 = vector.multi_reduction <add>, %206, %cst_78 [1] : vector<16x32xf32> to vector<16xf32>
    %208 = vector.shape_cast %207 : vector<16xf32> to vector<16x1xf32>
    %cst_79 = arith.constant 3.200000e+01 : f32
    %209 = vector.broadcast %cst_79 : f32 to vector<16x1xf32>
    %210 = arith.divf %208, %209 : vector<16x1xf32>
    %211 = vector.broadcast %203 : vector<16x1xf32> to vector<16x32xf32>
    %212 = arith.subf %195, %211 : vector<16x32xf32>
    %cst_80 = arith.constant 9.99999996E-13 : f32
    %213 = vector.broadcast %cst_80 : f32 to vector<16x1xf32>
    %214 = arith.addf %210, %213 : vector<16x1xf32>
    %215 = math.rsqrt %214 : vector<16x1xf32>
    %216 = vector.broadcast %215 : vector<16x1xf32> to vector<16x32xf32>
    %217 = arith.mulf %212, %216 : vector<16x32xf32>
    %218 = vector.broadcast %197 : vector<1x32xf32> to vector<16x32xf32>
    %219 = arith.mulf %217, %218 : vector<16x32xf32>
    %220 = vector.broadcast %199 : vector<1x32xf32> to vector<16x32xf32>
    %221 = arith.addf %219, %220 : vector<16x32xf32>
    %c0_81 = arith.constant 0 : index
    %c0_82 = arith.constant 0 : index
    %222 = vector.load %arg18[%c0_81, %c0_82] : memref<16x32xf32, #tpu.memory_space<vmem>>, vector<16x32xf32>
    tpu.vector_store %arg18[%c0_81, %c0_82], %221 {strides = array<i32>} : memref<16x32xf32, #tpu.memory_space<vmem>>, vector<16x32xf32>,
    %c1_i32 = arith.constant 1 : i32
    %223 = arith.cmpi eq, %arg0, %c1_i32 : i32
    %224 = arith.extui %223 : i1 to i32
    %c0_i32_83 = arith.constant 0 : i32
    %225 = arith.cmpi ne, %224, %c0_i32_83 : i32
    scf.if %225 {
      %c0_84 = arith.constant 0 : index
      %c0_85 = arith.constant 0 : index
      %226 = vector.load %arg17[%c0_84, %c0_85] : memref<16x32xf32, #tpu.memory_space<vmem>>, vector<16x32xf32>
      tpu.vector_store %arg17[%c0_84, %c0_85], %221 {strides = array<i32>} : memref<16x32xf32, #tpu.memory_space<vmem>>, vector<16x32xf32>,
    } else {
    }
    return
  }
  func.func @transform_0(%arg0: i32) -> (i32, i32) {
    %c0_i32 = arith.constant 0 : i32
    %c0_i32_0 = arith.constant 0 : i32
    %c0_i32_1 = arith.constant 0 : i32
    return %c0_i32, %c0_i32_0 : i32, i32
  }
  func.func @transform_1(%arg0: i32) -> (i32, i32, i32) {
    %c0_i32 = arith.constant 0 : i32
    %c0_i32_0 = arith.constant 0 : i32
    %c0_i32_1 = arith.constant 0 : i32
    %c0_i32_2 = arith.constant 0 : i32
    return %c0_i32, %c0_i32_0, %c0_i32_1 : i32, i32, i32
  }
  func.func @transform_2(%arg0: i32) -> (i32, i32) {
    %c0_i32 = arith.constant 0 : i32
    %c0_i32_0 = arith.constant 0 : i32
    %c0_i32_1 = arith.constant 0 : i32
    return %c0_i32, %c0_i32_0 : i32, i32
  }
  func.func @transform_3(%arg0: i32) -> (i32, i32) {
    %c0_i32 = arith.constant 0 : i32
    %c0_i32_0 = arith.constant 0 : i32
    %c0_i32_1 = arith.constant 0 : i32
    return %c0_i32, %c0_i32_0 : i32, i32
  }
  func.func @transform_4(%arg0: i32) -> (i32, i32, i32) {
    %c0_i32 = arith.constant 0 : i32
    %c0_i32_0 = arith.constant 0 : i32
    %c0_i32_1 = arith.constant 0 : i32
    return %arg0, %c0_i32, %c0_i32_0 : i32, i32, i32
  }
  func.func @transform_5(%arg0: i32) -> (i32, i32, i32) {
    %c0_i32 = arith.constant 0 : i32
    %c0_i32_0 = arith.constant 0 : i32
    %c0_i32_1 = arith.constant 0 : i32
    return %arg0, %c0_i32, %c0_i32_0 : i32, i32, i32
  }
  func.func @transform_6(%arg0: i32) -> (i32, i32, i32) {
    %c0_i32 = arith.constant 0 : i32
    %c0_i32_0 = arith.constant 0 : i32
    %c0_i32_1 = arith.constant 0 : i32
    return %arg0, %c0_i32, %c0_i32_0 : i32, i32, i32
  }
  func.func @transform_7(%arg0: i32) -> (i32, i32, i32) {
    %c0_i32 = arith.constant 0 : i32
    %c0_i32_0 = arith.constant 0 : i32
    %c0_i32_1 = arith.constant 0 : i32
    return %arg0, %c0_i32, %c0_i32_0 : i32, i32, i32
  }
  func.func @transform_8(%arg0: i32) -> (i32, i32, i32) {
    %c0_i32 = arith.constant 0 : i32
    %c0_i32_0 = arith.constant 0 : i32
    %c0_i32_1 = arith.constant 0 : i32
    return %arg0, %c0_i32, %c0_i32_0 : i32, i32, i32
  }
  func.func @transform_9(%arg0: i32) -> (i32, i32, i32) {
    %c0_i32 = arith.constant 0 : i32
    %c0_i32_0 = arith.constant 0 : i32
    %c0_i32_1 = arith.constant 0 : i32
    return %arg0, %c0_i32, %c0_i32_0 : i32, i32, i32
  }
  func.func @transform_10(%arg0: i32) -> (i32, i32, i32) {
    %c0_i32 = arith.constant 0 : i32
    %c0_i32_0 = arith.constant 0 : i32
    %c0_i32_1 = arith.constant 0 : i32
    return %arg0, %c0_i32, %c0_i32_0 : i32, i32, i32
  }
  func.func @transform_11(%arg0: i32) -> (i32, i32, i32) {
    %c0_i32 = arith.constant 0 : i32
    %c0_i32_0 = arith.constant 0 : i32
    %c0_i32_1 = arith.constant 0 : i32
    return %arg0, %c0_i32, %c0_i32_0 : i32, i32, i32
  }
  func.func @transform_12(%arg0: i32) -> (i32, i32, i32) {
    %c0_i32 = arith.constant 0 : i32
    %c0_i32_0 = arith.constant 0 : i32
    %c0_i32_1 = arith.constant 0 : i32
    return %arg0, %c0_i32, %c0_i32_0 : i32, i32, i32
  }
  func.func @transform_13(%arg0: i32) -> (i32, i32, i32) {
    %c0_i32 = arith.constant 0 : i32
    %c0_i32_0 = arith.constant 0 : i32
    %c0_i32_1 = arith.constant 0 : i32
    return %arg0, %c0_i32, %c0_i32_0 : i32, i32, i32
  }
  func.func @transform_14(%arg0: i32) -> (i32, i32, i32) {
    %c0_i32 = arith.constant 0 : i32
    %c0_i32_0 = arith.constant 0 : i32
    %c0_i32_1 = arith.constant 0 : i32
    return %arg0, %c0_i32, %c0_i32_0 : i32, i32, i32
  }
  func.func @transform_15(%arg0: i32) -> (i32, i32, i32) {
    %c0_i32 = arith.constant 0 : i32
    %c0_i32_0 = arith.constant 0 : i32
    %c0_i32_1 = arith.constant 0 : i32
    return %arg0, %c0_i32, %c0_i32_0 : i32, i32, i32
  }
  func.func @transform_16(%arg0: i32) -> (i32, i32) {
    %c0_i32 = arith.constant 0 : i32
    %c0_i32_0 = arith.constant 0 : i32
    %c0_i32_1 = arith.constant 0 : i32
    return %c0_i32, %c0_i32_0 : i32, i32
  }
}

</mosaic_0001>

<llo_original>
// kernel: encoder_forward.1
$region0: #{encoder_forward.1}
  #allocation0 [shape = 'u32[]', space=smem, size = 0x4, offset = 0x4, fixed_abs, tag = 'smem constant byte address 0x4 - core index']
  #allocation1 [shape = 'u32[72,128]{1,0:T(1,128)}', space=vmem, size = 0x9000, scoped, tag = 'internal scratch']
  #allocation2 [shape = 'f32[16,32]{1,0:T(8,128)}', space=vmem, size = 0x2000, scoped, tag = 'scratch operand']
  %s0 = inlined_call_operand.vmem [shape: f32[16,32], index: 0, kind: input, shape index: {}]
  %s1 = inlined_call_operand.vmem [shape: f32[2,1,8], index: 1, kind: input, shape index: {}]
  %s2 = inlined_call_operand.vmem [shape: f32[1,32], index: 2, kind: input, shape index: {}]
  %s3 = inlined_call_operand.vmem [shape: f32[1,32], index: 3, kind: input, shape index: {}]
  %s4 = inlined_call_operand.vmem [shape: bf16[2,32,96], index: 4, kind: input, shape index: {}]
  %s5 = inlined_call_operand.vmem [shape: f32[2,1,96], index: 5, kind: input, shape index: {}]
  %s6 = inlined_call_operand.vmem [shape: bf16[2,32,32], index: 6, kind: input, shape index: {}]
  %s7 = inlined_call_operand.vmem [shape: f32[2,1,32], index: 7, kind: input, shape index: {}, may-alias: {7,9,13,15}]
  %s8 = inlined_call_operand.vmem [shape: f32[2,1,32], index: 8, kind: input, shape index: {}, may-alias: {8,14}]
  %s9 = inlined_call_operand.vmem [shape: f32[2,1,32], index: 9, kind: input, shape index: {}, may-alias: {7,9,13,15}]
  %s10 = inlined_call_operand.vmem [shape: bf16[2,32,64], index: 10, kind: input, shape index: {}]
  %s11 = inlined_call_operand.vmem [shape: f32[2,1,64], index: 11, kind: input, shape index: {}]
  %s12 = inlined_call_operand.vmem [shape: bf16[2,64,32], index: 12, kind: input, shape index: {}]
  %s13 = inlined_call_operand.vmem [shape: f32[2,1,32], index: 13, kind: input, shape index: {}, may-alias: {7,9,13,15}]
  %s14 = inlined_call_operand.vmem [shape: f32[2,1,32], index: 14, kind: input, shape index: {}, may-alias: {8,14}]
  %s15 = inlined_call_operand.vmem [shape: f32[2,1,32], index: 15, kind: input, shape index: {}, may-alias: {7,9,13,15}]
  %s16 = inlined_call_operand.vmem [shape: f32[16,32], index: 16, kind: output, shape index: {}]
  %s17 = sld [smem:[#allocation0]]
  $region105: #{encoder_forward.1} parent=0
    _
  %s19 = ssub.s32 1, %s17
  %s20 = scalar_select 0, %s19, %s17
  loop: start=0, step=1, limit=4
  $region2: #{encoder_forward.1} parent=0 // loop_pre_header
    _
  $region3: #{encoder_forward.1} parent=0 // loop_header
    %s22 = sphi 0, %s26
    %p23 = scmp.ge.s32.totalorder %s22, 4
    %s30 = sphi 0, %s30
    %s32 = sphi 0, %s30
    %s33 = sphi 0, %s32
    %s47 = sphi 0, %s33
    %s51 = sphi 0, %s51
    %s53 = sphi 0, %s51
    %s54 = sphi 0, %s53
    %s68 = sphi 0, %s54
    %s72 = sphi 0, %s72
    %s74 = sphi 0, %s72
    %s75 = sphi 0, %s74
    %s89 = sphi 0, %s75
    %s93 = sphi 0, %s93
    %s95 = sphi 0, %s93
    %s96 = sphi 0, %s95
    %s110 = sphi 0, %s96
    %s116 = sphi 0, %s118
    %s119 = sphi 0, %s116
    %s120 = sphi 0, %s119
    %s136 = sphi 0, %s120
    %s142 = sphi 0, %s144
    %s145 = sphi 0, %s142
    %s146 = sphi 0, %s145
    %s162 = sphi 0, %s146
    %s168 = sphi 0, %s170
    %s171 = sphi 0, %s168
    %s172 = sphi 0, %s171
    %s188 = sphi 0, %s172
    %s194 = sphi 0, %s196
    %s197 = sphi 0, %s194
    %s198 = sphi 0, %s197
    %s214 = sphi 0, %s198
    %s220 = sphi 0, %s222
    %s223 = sphi 0, %s220
    %s224 = sphi 0, %s223
    %s240 = sphi 0, %s224
    %s246 = sphi 0, %s248
    %s249 = sphi 0, %s246
    %s250 = sphi 0, %s249
    %s266 = sphi 0, %s250
    %s272 = sphi 0, %s274
    %s275 = sphi 0, %s272
    %s276 = sphi 0, %s275
    %s292 = sphi 0, %s276
    %s298 = sphi 0, %s300
    %s301 = sphi 0, %s298
    %s302 = sphi 0, %s301
    %s318 = sphi 0, %s302
    %s324 = sphi 0, %s326
    %s327 = sphi 0, %s324
    %s328 = sphi 0, %s327
    %s344 = sphi 0, %s328
    %s350 = sphi 0, %s352
    %s353 = sphi 0, %s350
    %s354 = sphi 0, %s353
    %s370 = sphi 0, %s354
    %s376 = sphi 0, %s378
    %s379 = sphi 0, %s376
    %s380 = sphi 0, %s379
    %s396 = sphi 0, %s380
    %s402 = sphi 0, %s404
    %s405 = sphi 0, %s402
    %s406 = sphi 0, %s405
    %s422 = sphi 0, %s406
    %s426 = sphi 0, %s426
    %s428 = sphi 0, %s426
    %s429 = sphi 0, %s428
    %s443 = sphi 0, %s429
  $region4: #{encoder_forward.1} parent=0 // loop_header_branch
    %25 = sbr.rel (%p23) target = $region8
  $region5: #{encoder_forward.1} parent=0 // loop_body
    %s27 = ssub.s32 %s22, 1
    %s28 = ssub.s32 %s22, 2
    %s29 = sadd.s32 %s22, 1
    %s31 = sadd.s32 %s30, 1
    %p34 = scmp.eq.s32.totalorder %s22, 1
    %p35 = scmp.ne.s32.totalorder %s30, %s32
    %p36 = scmp.eq.s32.totalorder %s22, 0
    %p37 = por %p35, %p36
    %p38 = scmp.ne.s32.totalorder %s30, %s32
    %p39 = scmp.eq.s32.totalorder %s27, 1
    %p40 = por %p38, %p39
    %p41 = scmp.ne.s32.totalorder %s32, %s33
    %p42 = scmp.eq.s32.totalorder %s27, 0
    %p43 = por %p41, %p42
    %p44 = scmp.ne.s32.totalorder %s32, %s33
    %p45 = scmp.eq.s32.totalorder %s28, 1
    %p46 = por %p44, %p45
    %p48 = scmp.ne.s32.totalorder %s33, %s47
    %p49 = scmp.eq.s32.totalorder %s28, 0
    %p50 = por %p48, %p49
    %s52 = sadd.s32 %s51, 1
    %p55 = scmp.eq.s32.totalorder %s22, 1
    %p56 = scmp.ne.s32.totalorder %s51, %s53
    %p57 = scmp.eq.s32.totalorder %s22, 0
    %p58 = por %p56, %p57
    %p59 = scmp.ne.s32.totalorder %s51, %s53
    %p60 = scmp.eq.s32.totalorder %s27, 1
    %p61 = por %p59, %p60
    %p62 = scmp.ne.s32.totalorder %s53, %s54
    %p63 = scmp.eq.s32.totalorder %s27, 0
    %p64 = por %p62, %p63
    %p65 = scmp.ne.s32.totalorder %s53, %s54
    %p66 = scmp.eq.s32.totalorder %s28, 1
    %p67 = por %p65, %p66
    %p69 = scmp.ne.s32.totalorder %s54, %s68
    %p70 = scmp.eq.s32.totalorder %s28, 0
    %p71 = por %p69, %p70
    %s73 = sadd.s32 %s72, 1
    %p76 = scmp.eq.s32.totalorder %s22, 1
    %p77 = scmp.ne.s32.totalorder %s72, %s74
    %p78 = scmp.eq.s32.totalorder %s22, 0
    %p79 = por %p77, %p78
    %p80 = scmp.ne.s32.totalorder %s72, %s74
    %p81 = scmp.eq.s32.totalorder %s27, 1
    %p82 = por %p80, %p81
    %p83 = scmp.ne.s32.totalorder %s74, %s75
    %p84 = scmp.eq.s32.totalorder %s27, 0
    %p85 = por %p83, %p84
    %p86 = scmp.ne.s32.totalorder %s74, %s75
    %p87 = scmp.eq.s32.totalorder %s28, 1
    %p88 = por %p86, %p87
    %p90 = scmp.ne.s32.totalorder %s75, %s89
    %p91 = scmp.eq.s32.totalorder %s28, 0
    %p92 = por %p90, %p91
    %s94 = sadd.s32 %s93, 1
    %p97 = scmp.eq.s32.totalorder %s22, 1
    %p98 = scmp.ne.s32.totalorder %s93, %s95
    %p99 = scmp.eq.s32.totalorder %s22, 0
    %p100 = por %p98, %p99
    %p101 = scmp.ne.s32.totalorder %s93, %s95
    %p102 = scmp.eq.s32.totalorder %s27, 1
    %p103 = por %p101, %p102
    %p104 = scmp.ne.s32.totalorder %s95, %s96
    %p105 = scmp.eq.s32.totalorder %s27, 0
    %p106 = por %p104, %p105
    %p107 = scmp.ne.s32.totalorder %s95, %s96
    %p108 = scmp.eq.s32.totalorder %s28, 1
    %p109 = por %p107, %p108
    %p111 = scmp.ne.s32.totalorder %s96, %s110
    %p112 = scmp.eq.s32.totalorder %s28, 0
    %p113 = por %p111, %p112
    %s114 = ssub.s32 %s22, %s29
    %p115 = scmp.eq.s32.totalorder %s114, 0
    %s117 = sadd.s32 %s116, 1
    %s118 = scalar_select %p115, %s116, %s117
    %p121 = pneg %p115
    %p122 = scmp.eq.s32.totalorder %s22, 1
    %p123 = por %p121, %p122
    %p124 = scmp.ne.s32.totalorder %s116, %s119
    %p125 = scmp.eq.s32.totalorder %s22, 0
    %p126 = por %p124, %p125
    %p127 = scmp.ne.s32.totalorder %s116, %s119
    %p128 = scmp.eq.s32.totalorder %s27, 1
    %p129 = por %p127, %p128
    %p130 = scmp.ne.s32.totalorder %s119, %s120
    %p131 = scmp.eq.s32.totalorder %s27, 0
    %p132 = por %p130, %p131
    %p133 = scmp.ne.s32.totalorder %s119, %s120
    %p134 = scmp.eq.s32.totalorder %s28, 1
    %p135 = por %p133, %p134
    %p137 = scmp.ne.s32.totalorder %s120, %s136
    %p138 = scmp.eq.s32.totalorder %s28, 0
    %p139 = por %p137, %p138
    %s140 = ssub.s32 %s22, %s29
    %p141 = scmp.eq.s32.totalorder %s140, 0
    %s143 = sadd.s32 %s142, 1
    %s144 = scalar_select %p141, %s142, %s143
    %p147 = pneg %p141
    %p148 = scmp.eq.s32.totalorder %s22, 1
    %p149 = por %p147, %p148
    %p150 = scmp.ne.s32.totalorder %s142, %s145
    %p151 = scmp.eq.s32.totalorder %s22, 0
    %p152 = por %p150, %p151
    %p153 = scmp.ne.s32.totalorder %s142, %s145
    %p154 = scmp.eq.s32.totalorder %s27, 1
    %p155 = por %p153, %p154
    %p156 = scmp.ne.s32.totalorder %s145, %s146
    %p157 = scmp.eq.s32.totalorder %s27, 0
    %p158 = por %p156, %p157
    %p159 = scmp.ne.s32.totalorder %s145, %s146
    %p160 = scmp.eq.s32.totalorder %s28, 1
    %p161 = por %p159, %p160
    %p163 = scmp.ne.s32.totalorder %s146, %s162
    %p164 = scmp.eq.s32.totalorder %s28, 0
    %p165 = por %p163, %p164
    %s166 = ssub.s32 %s22, %s29
    %p167 = scmp.eq.s32.totalorder %s166, 0
    %s169 = sadd.s32 %s168, 1
    %s170 = scalar_select %p167, %s168, %s169
    %p173 = pneg %p167
    %p174 = scmp.eq.s32.totalorder %s22, 1
    %p175 = por %p173, %p174
    %p176 = scmp.ne.s32.totalorder %s168, %s171
    %p177 = scmp.eq.s32.totalorder %s22, 0
    %p178 = por %p176, %p177
    %p179 = scmp.ne.s32.totalorder %s168, %s171
    %p180 = scmp.eq.s32.totalorder %s27, 1
    %p181 = por %p179, %p180
    %p182 = scmp.ne.s32.totalorder %s171, %s172
    %p183 = scmp.eq.s32.totalorder %s27, 0
    %p184 = por %p182, %p183
    %p185 = scmp.ne.s32.totalorder %s171, %s172
    %p186 = scmp.eq.s32.totalorder %s28, 1
    %p187 = por %p185, %p186
    %p189 = scmp.ne.s32.totalorder %s172, %s188
    %p190 = scmp.eq.s32.totalorder %s28, 0
    %p191 = por %p189, %p190
    %s192 = ssub.s32 %s22, %s29
    %p193 = scmp.eq.s32.totalorder %s192, 0
    %s195 = sadd.s32 %s194, 1
    %s196 = scalar_select %p193, %s194, %s195
    %p199 = pneg %p193
    %p200 = scmp.eq.s32.totalorder %s22, 1
    %p201 = por %p199, %p200
    %p202 = scmp.ne.s32.totalorder %s194, %s197
    %p203 = scmp.eq.s32.totalorder %s22, 0
    %p204 = por %p202, %p203
    %p205 = scmp.ne.s32.totalorder %s194, %s197
    %p206 = scmp.eq.s32.totalorder %s27, 1
    %p207 = por %p205, %p206
    %p208 = scmp.ne.s32.totalorder %s197, %s198
    %p209 = scmp.eq.s32.totalorder %s27, 0
    %p210 = por %p208, %p209
    %p211 = scmp.ne.s32.totalorder %s197, %s198
    %p212 = scmp.eq.s32.totalorder %s28, 1
    %p213 = por %p211, %p212
    %p215 = scmp.ne.s32.totalorder %s198, %s214
    %p216 = scmp.eq.s32.totalorder %s28, 0
    %p217 = por %p215, %p216
    %s218 = ssub.s32 %s22, %s29
    %p219 = scmp.eq.s32.totalorder %s218, 0
    %s221 = sadd.s32 %s220, 1
    %s222 = scalar_select %p219, %s220, %s221
    %p225 = pneg %p219
    %p226 = scmp.eq.s32.totalorder %s22, 1
    %p227 = por %p225, %p226
    %p228 = scmp.ne.s32.totalorder %s220, %s223
    %p229 = scmp.eq.s32.totalorder %s22, 0
    %p230 = por %p228, %p229
    %p231 = scmp.ne.s32.totalorder %s220, %s223
    %p232 = scmp.eq.s32.totalorder %s27, 1
    %p233 = por %p231, %p232
    %p234 = scmp.ne.s32.totalorder %s223, %s224
    %p235 = scmp.eq.s32.totalorder %s27, 0
    %p236 = por %p234, %p235
    %p237 = scmp.ne.s32.totalorder %s223, %s224
    %p238 = scmp.eq.s32.totalorder %s28, 1
    %p239 = por %p237, %p238
    %p241 = scmp.ne.s32.totalorder %s224, %s240
    %p242 = scmp.eq.s32.totalorder %s28, 0
    %p243 = por %p241, %p242
    %s244 = ssub.s32 %s22, %s29
    %p245 = scmp.eq.s32.totalorder %s244, 0
    %s247 = sadd.s32 %s246, 1
    %s248 = scalar_select %p245, %s246, %s247
    %p251 = pneg %p245
    %p252 = scmp.eq.s32.totalorder %s22, 1
    %p253 = por %p251, %p252
    %p254 = scmp.ne.s32.totalorder %s246, %s249
    %p255 = scmp.eq.s32.totalorder %s22, 0
    %p256 = por %p254, %p255
    %p257 = scmp.ne.s32.totalorder %s246, %s249
    %p258 = scmp.eq.s32.totalorder %s27, 1
    %p259 = por %p257, %p258
    %p260 = scmp.ne.s32.totalorder %s249, %s250
    %p261 = scmp.eq.s32.totalorder %s27, 0
    %p262 = por %p260, %p261
    %p263 = scmp.ne.s32.totalorder %s249, %s250
    %p264 = scmp.eq.s32.totalorder %s28, 1
    %p265 = por %p263, %p264
    %p267 = scmp.ne.s32.totalorder %s250, %s266
    %p268 = scmp.eq.s32.totalorder %s28, 0
    %p269 = por %p267, %p268
    %s270 = ssub.s32 %s22, %s29
    %p271 = scmp.eq.s32.totalorder %s270, 0
    %s273 = sadd.s32 %s272, 1
    %s274 = scalar_select %p271, %s272, %s273
    %p277 = pneg %p271
    %p278 = scmp.eq.s32.totalorder %s22, 1
    %p279 = por %p277, %p278
    %p280 = scmp.ne.s32.totalorder %s272, %s275
    %p281 = scmp.eq.s32.totalorder %s22, 0
    %p282 = por %p280, %p281
    %p283 = scmp.ne.s32.totalorder %s272, %s275
    %p284 = scmp.eq.s32.totalorder %s27, 1
    %p285 = por %p283, %p284
    %p286 = scmp.ne.s32.totalorder %s275, %s276
    %p287 = scmp.eq.s32.totalorder %s27, 0
    %p288 = por %p286, %p287
    %p289 = scmp.ne.s32.totalorder %s275, %s276
    %p290 = scmp.eq.s32.totalorder %s28, 1
    %p291 = por %p289, %p290
    %p293 = scmp.ne.s32.totalorder %s276, %s292
    %p294 = scmp.eq.s32.totalorder %s28, 0
    %p295 = por %p293, %p294
    %s296 = ssub.s32 %s22, %s29
    %p297 = scmp.eq.s32.totalorder %s296, 0
    %s299 = sadd.s32 %s298, 1
    %s300 = scalar_select %p297, %s298, %s299
    %p303 = pneg %p297
    %p304 = scmp.eq.s32.totalorder %s22, 1
    %p305 = por %p303, %p304
    %p306 = scmp.ne.s32.totalorder %s298, %s301
    %p307 = scmp.eq.s32.totalorder %s22, 0
    %p308 = por %p306, %p307
    %p309 = scmp.ne.s32.totalorder %s298, %s301
    %p310 = scmp.eq.s32.totalorder %s27, 1
    %p311 = por %p309, %p310
    %p312 = scmp.ne.s32.totalorder %s301, %s302
    %p313 = scmp.eq.s32.totalorder %s27, 0
    %p314 = por %p312, %p313
    %p315 = scmp.ne.s32.totalorder %s301, %s302
    %p316 = scmp.eq.s32.totalorder %s28, 1
    %p317 = por %p315, %p316
    %p319 = scmp.ne.s32.totalorder %s302, %s318
    %p320 = scmp.eq.s32.totalorder %s28, 0
    %p321 = por %p319, %p320
    %s322 = ssub.s32 %s22, %s29
    %p323 = scmp.eq.s32.totalorder %s322, 0
    %s325 = sadd.s32 %s324, 1
    %s326 = scalar_select %p323, %s324, %s325
    %p329 = pneg %p323
    %p330 = scmp.eq.s32.totalorder %s22, 1
    %p331 = por %p329, %p330
    %p332 = scmp.ne.s32.totalorder %s324, %s327
    %p333 = scmp.eq.s32.totalorder %s22, 0
    %p334 = por %p332, %p333
    %p335 = scmp.ne.s32.totalorder %s324, %s327
    %p336 = scmp.eq.s32.totalorder %s27, 1
    %p337 = por %p335, %p336
    %p338 = scmp.ne.s32.totalorder %s327, %s328
    %p339 = scmp.eq.s32.totalorder %s27, 0
    %p340 = por %p338, %p339
    %p341 = scmp.ne.s32.totalorder %s327, %s328
    %p342 = scmp.eq.s32.totalorder %s28, 1
    %p343 = por %p341, %p342
    %p345 = scmp.ne.s32.totalorder %s328, %s344
    %p346 = scmp.eq.s32.totalorder %s28, 0
    %p347 = por %p345, %p346
    %s348 = ssub.s32 %s22, %s29
    %p349 = scmp.eq.s32.totalorder %s348, 0
    %s351 = sadd.s32 %s350, 1
    %s352 = scalar_select %p349, %s350, %s351
    %p355 = pneg %p349
    %p356 = scmp.eq.s32.totalorder %s22, 1
    %p357 = por %p355, %p356
    %p358 = scmp.ne.s32.totalorder %s350, %s353
    %p359 = scmp.eq.s32.totalorder %s22, 0
    %p360 = por %p358, %p359
    %p361 = scmp.ne.s32.totalorder %s350, %s353
    %p362 = scmp.eq.s32.totalorder %s27, 1
    %p363 = por %p361, %p362
    %p364 = scmp.ne.s32.totalorder %s353, %s354
    %p365 = scmp.eq.s32.totalorder %s27, 0
    %p366 = por %p364, %p365
    %p367 = scmp.ne.s32.totalorder %s353, %s354
    %p368 = scmp.eq.s32.totalorder %s28, 1
    %p369 = por %p367, %p368
    %p371 = scmp.ne.s32.totalorder %s354, %s370
    %p372 = scmp.eq.s32.totalorder %s28, 0
    %p373 = por %p371, %p372
    %s374 = ssub.s32 %s22, %s29
    %p375 = scmp.eq.s32.totalorder %s374, 0
    %s377 = sadd.s32 %s376, 1
    %s378 = scalar_select %p375, %s376, %s377
    %p381 = pneg %p375
    %p382 = scmp.eq.s32.totalorder %s22, 1
    %p383 = por %p381, %p382
    %p384 = scmp.ne.s32.totalorder %s376, %s379
    %p385 = scmp.eq.s32.totalorder %s22, 0
    %p386 = por %p384, %p385
    %p387 = scmp.ne.s32.totalorder %s376, %s379
    %p388 = scmp.eq.s32.totalorder %s27, 1
    %p389 = por %p387, %p388
    %p390 = scmp.ne.s32.totalorder %s379, %s380
    %p391 = scmp.eq.s32.totalorder %s27, 0
    %p392 = por %p390, %p391
    %p393 = scmp.ne.s32.totalorder %s379, %s380
    %p394 = scmp.eq.s32.totalorder %s28, 1
    %p395 = por %p393, %p394
    %p397 = scmp.ne.s32.totalorder %s380, %s396
    %p398 = scmp.eq.s32.totalorder %s28, 0
    %p399 = por %p397, %p398
    %s400 = ssub.s32 %s22, %s29
    %p401 = scmp.eq.s32.totalorder %s400, 0
    %s403 = sadd.s32 %s402, 1
    %s404 = scalar_select %p401, %s402, %s403
    %p407 = pneg %p401
    %p408 = scmp.eq.s32.totalorder %s22, 1
    %p409 = por %p407, %p408
    %p410 = scmp.ne.s32.totalorder %s402, %s405
    %p411 = scmp.eq.s32.totalorder %s22, 0
    %p412 = por %p410, %p411
    %p413 = scmp.ne.s32.totalorder %s402, %s405
    %p414 = scmp.eq.s32.totalorder %s27, 1
    %p415 = por %p413, %p414
    %p416 = scmp.ne.s32.totalorder %s405, %s406
    %p417 = scmp.eq.s32.totalorder %s27, 0
    %p418 = por %p416, %p417
    %p419 = scmp.ne.s32.totalorder %s405, %s406
    %p420 = scmp.eq.s32.totalorder %s28, 1
    %p421 = por %p419, %p420
    %p423 = scmp.ne.s32.totalorder %s406, %s422
    %p424 = scmp.eq.s32.totalorder %s28, 0
    %p425 = por %p423, %p424
    %s427 = sadd.s32 %s426, 1
    %p430 = scmp.eq.s32.totalorder %s22, 1
    %p431 = scmp.ne.s32.totalorder %s426, %s428
    %p432 = scmp.eq.s32.totalorder %s22, 0
    %p433 = por %p431, %p432
    %p434 = scmp.ne.s32.totalorder %s426, %s428
    %p435 = scmp.eq.s32.totalorder %s27, 1
    %p436 = por %p434, %p435
    %p437 = scmp.ne.s32.totalorder %s428, %s429
    %p438 = scmp.eq.s32.totalorder %s27, 0
    %p439 = por %p437, %p438
    %p440 = scmp.ne.s32.totalorder %s428, %s429
    %p441 = scmp.eq.s32.totalorder %s28, 1
    %p442 = por %p440, %p441
    %p444 = scmp.ne.s32.totalorder %s429, %s443
    %p445 = scmp.eq.s32.totalorder %s28, 0
    %p446 = por %p444, %p445
    %p447 = scmp.le.s32.totalorder 1, %s22
    %p448 = scmp.lt.s32.totalorder %s22, 3
    %p449 = pnand %p447, %p448
    %p450 = pneg %p449
    // Predicated region
    $region9: #{encoder_forward.1} parent=5 // pred_check
      _
    $region10: #{encoder_forward.1} parent=5 // pred_check_branch
      %452 = sbr.rel (%p449) target = $region12
    $region11: #{encoder_forward.1} parent=5 // pred_region
      %s453 = ssub.s32 %s22, 1
      // Predicated region
      $region13: #{encoder_forward.1} parent=11 // pred_check
        %p454 = pneg %p43
      $region14: #{encoder_forward.1} parent=11 // pred_check_branch
        %456 = sbr.rel (%p454) target = $region16
      $region15: #{encoder_forward.1} parent=11 // pred_region
        _
      $region16: #{encoder_forward.1} parent=11 // pred_fallthru
        _
      // Predicated region
      $region17: #{encoder_forward.1} parent=11 // pred_check
        %p457 = pneg %p64
      $region18: #{encoder_forward.1} parent=11 // pred_check_branch
        %459 = sbr.rel (%p457) target = $region20
      $region19: #{encoder_forward.1} parent=11 // pred_region
        _
      $region20: #{encoder_forward.1} parent=11 // pred_fallthru
        _
      // Predicated region
      $region21: #{encoder_forward.1} parent=11 // pred_check
        %p460 = pneg %p85
      $region22: #{encoder_forward.1} parent=11 // pred_check_branch
        %462 = sbr.rel (%p460) target = $region24
      $region23: #{encoder_forward.1} parent=11 // pred_region
        _
      $region24: #{encoder_forward.1} parent=11 // pred_fallthru
        _
      // Predicated region
      $region25: #{encoder_forward.1} parent=11 // pred_check
        %p463 = pneg %p106
      $region26: #{encoder_forward.1} parent=11 // pred_check_branch
        %465 = sbr.rel (%p463) target = $region28
      $region27: #{encoder_forward.1} parent=11 // pred_region
        _
      $region28: #{encoder_forward.1} parent=11 // pred_fallthru
        _
    $region12: #{encoder_forward.1} parent=5 // pred_fallthru
      _
    %p466 = scmp.lt.s32.totalorder %s22, 2
    // Predicated region
    $region29: #{encoder_forward.1} parent=5 // pred_check
      %p467 = pneg %p466
    $region30: #{encoder_forward.1} parent=5 // pred_check_branch
      %469 = sbr.rel (%p467) target = $region32
    $region31: #{encoder_forward.1} parent=5 // pred_region
      // Predicated region
      $region33: #{encoder_forward.1} parent=31 // pred_check
        %p470 = pneg %p126
      $region34: #{encoder_forward.1} parent=31 // pred_check_branch
        %472 = sbr.rel (%p470) target = $region36
      $region35: #{encoder_forward.1} parent=31 // pred_region
        %p473 = scmp.lt.s32.totalorder %s22, 1
        %s474 = scalar_select %p473, %s22, 1
        %s475 = smul.addr %s474, 4
        %s476 = smul.addr %s475, 4
        %s477 = scalar_lea.vmem %s4, %s476
      $region36: #{encoder_forward.1} parent=31 // pred_fallthru
        _
      // Predicated region
      $region37: #{encoder_forward.1} parent=31 // pred_check
        %p478 = pneg %p152
      $region38: #{encoder_forward.1} parent=31 // pred_check_branch
        %480 = sbr.rel (%p478) target = $region40
      $region39: #{encoder_forward.1} parent=31 // pred_region
        %p481 = scmp.lt.s32.totalorder %s22, 1
        %s482 = scalar_select %p481, %s22, 1
        %s483 = scalar_lea.vmem %s5, %s482
      $region40: #{encoder_forward.1} parent=31 // pred_fallthru
        _
      // Predicated region
      $region41: #{encoder_forward.1} parent=31 // pred_check
        %p484 = pneg %p178
      $region42: #{encoder_forward.1} parent=31 // pred_check_branch
        %486 = sbr.rel (%p484) target = $region44
      $region43: #{encoder_forward.1} parent=31 // pred_region
        %p487 = scmp.lt.s32.totalorder %s22, 1
        %s488 = scalar_select %p487, %s22, 1
        %s489 = smul.addr %s488, 4
        %s490 = smul.addr %s489, 4
        %s491 = scalar_lea.vmem %s6, %s490
      $region44: #{encoder_forward.1} parent=31 // pred_fallthru
        _
      // Predicated region
      $region45: #{encoder_forward.1} parent=31 // pred_check
        %p492 = pneg %p204
      $region46: #{encoder_forward.1} parent=31 // pred_check_branch
        %494 = sbr.rel (%p492) target = $region48
      $region47: #{encoder_forward.1} parent=31 // pred_region
        %p495 = scmp.lt.s32.totalorder %s22, 1
        %s496 = scalar_select %p495, %s22, 1
        %s497 = scalar_lea.vmem %s7, %s496
      $region48: #{encoder_forward.1} parent=31 // pred_fallthru
        _
      // Predicated region
      $region49: #{encoder_forward.1} parent=31 // pred_check
        %p498 = pneg %p230
      $region50: #{encoder_forward.1} parent=31 // pred_check_branch
        %500 = sbr.rel (%p498) target = $region52
      $region51: #{encoder_forward.1} parent=31 // pred_region
        %p501 = scmp.lt.s32.totalorder %s22, 1
        %s502 = scalar_select %p501, %s22, 1
        %s503 = scalar_lea.vmem %s8, %s502
      $region52: #{encoder_forward.1} parent=31 // pred_fallthru
        _
      // Predicated region
      $region53: #{encoder_forward.1} parent=31 // pred_check
        %p504 = pneg %p256
      $region54: #{encoder_forward.1} parent=31 // pred_check_branch
        %506 = sbr.rel (%p504) target = $region56
      $region55: #{encoder_forward.1} parent=31 // pred_region
        %p507 = scmp.lt.s32.totalorder %s22, 1
        %s508 = scalar_select %p507, %s22, 1
        %s509 = scalar_lea.vmem %s9, %s508
      $region56: #{encoder_forward.1} parent=31 // pred_fallthru
        _
      // Predicated region
      $region57: #{encoder_forward.1} parent=31 // pred_check
        %p510 = pneg %p282
      $region58: #{encoder_forward.1} parent=31 // pred_check_branch
        %512 = sbr.rel (%p510) target = $region60
      $region59: #{encoder_forward.1} parent=31 // pred_region
        %p513 = scmp.lt.s32.totalorder %s22, 1
        %s514 = scalar_select %p513, %s22, 1
        %s515 = smul.addr %s514, 4
        %s516 = smul.addr %s515, 4
        %s517 = scalar_lea.vmem %s10, %s516
      $region60: #{encoder_forward.1} parent=31 // pred_fallthru
        _
      // Predicated region
      $region61: #{encoder_forward.1} parent=31 // pred_check
        %p518 = pneg %p308
      $region62: #{encoder_forward.1} parent=31 // pred_check_branch
        %520 = sbr.rel (%p518) target = $region64
      $region63: #{encoder_forward.1} parent=31 // pred_region
        %p521 = scmp.lt.s32.totalorder %s22, 1
        %s522 = scalar_select %p521, %s22, 1
        %s523 = scalar_lea.vmem %s11, %s522
      $region64: #{encoder_forward.1} parent=31 // pred_fallthru
        _
      // Predicated region
      $region65: #{encoder_forward.1} parent=31 // pred_check
        %p524 = pneg %p334
      $region66: #{encoder_forward.1} parent=31 // pred_check_branch
        %526 = sbr.rel (%p524) target = $region68
      $region67: #{encoder_forward.1} parent=31 // pred_region
        %p527 = scmp.lt.s32.totalorder %s22, 1
        %s528 = scalar_select %p527, %s22, 1
        %s529 = smul.addr %s528, 8
        %s530 = smul.addr %s529, 4
        %s531 = scalar_lea.vmem %s12, %s530
      $region68: #{encoder_forward.1} parent=31 // pred_fallthru
        _
      // Predicated region
      $region69: #{encoder_forward.1} parent=31 // pred_check
        %p532 = pneg %p360
      $region70: #{encoder_forward.1} parent=31 // pred_check_branch
        %534 = sbr.rel (%p532) target = $region72
      $region71: #{encoder_forward.1} parent=31 // pred_region
        %p535 = scmp.lt.s32.totalorder %s22, 1
        %s536 = scalar_select %p535, %s22, 1
        %s537 = scalar_lea.vmem %s13, %s536
      $region72: #{encoder_forward.1} parent=31 // pred_fallthru
        _
      // Predicated region
      $region73: #{encoder_forward.1} parent=31 // pred_check
        %p538 = pneg %p386
      $region74: #{encoder_forward.1} parent=31 // pred_check_branch
        %540 = sbr.rel (%p538) target = $region76
      $region75: #{encoder_forward.1} parent=31 // pred_region
        %p541 = scmp.lt.s32.totalorder %s22, 1
        %s542 = scalar_select %p541, %s22, 1
        %s543 = scalar_lea.vmem %s14, %s542
      $region76: #{encoder_forward.1} parent=31 // pred_fallthru
        _
      // Predicated region
      $region77: #{encoder_forward.1} parent=31 // pred_check
        %p544 = pneg %p412
      $region78: #{encoder_forward.1} parent=31 // pred_check_branch
        %546 = sbr.rel (%p544) target = $region80
      $region79: #{encoder_forward.1} parent=31 // pred_region
        %p547 = scmp.lt.s32.totalorder %s22, 1
        %s548 = scalar_select %p547, %s22, 1
        %s549 = scalar_lea.vmem %s15, %s548
      $region80: #{encoder_forward.1} parent=31 // pred_fallthru
        _
    $region32: #{encoder_forward.1} parent=5 // pred_fallthru
      _
    %p550 = scmp.le.s32.totalorder 1, %s22
    %p551 = scmp.lt.s32.totalorder %s22, 3
    %p552 = pnand %p550, %p551
    %p553 = pneg %p552
    // Predicated region
    $region81: #{encoder_forward.1} parent=5 // pred_check
      _
    $region82: #{encoder_forward.1} parent=5 // pred_check_branch
      %555 = sbr.rel (%p552) target = $region84
    $region83: #{encoder_forward.1} parent=5 // pred_region
      %s556 = ssub.s32 %s22, 1
      %p557 = pneg %p43
      %p558 = pneg %p40
      %p559 = pneg %p64
      %p560 = pneg %p61
      %p561 = pneg %p85
      %p562 = pneg %p82
      %p563 = pneg %p106
      %p564 = pneg %p103
      %p565 = scmp.lt.s32.totalorder %s27, 1
      %s566 = scalar_select %p565, %s27, 1
      %s567 = smul.addr %s566, 4
      %s568 = smul.addr %s567, 4
      %s569 = scalar_lea.vmem %s4, %s568
      %p570 = pneg %p132
      %p571 = pneg %p129
      %p572 = scmp.lt.s32.totalorder %s27, 1
      %s573 = scalar_select %p572, %s27, 1
      %s574 = scalar_lea.vmem %s5, %s573
      %p575 = pneg %p158
      %p576 = pneg %p155
      %p577 = scmp.lt.s32.totalorder %s27, 1
      %s578 = scalar_select %p577, %s27, 1
      %s579 = smul.addr %s578, 4
      %s580 = smul.addr %s579, 4
      %s581 = scalar_lea.vmem %s6, %s580
      %p582 = pneg %p184
      %p583 = pneg %p181
      %p584 = scmp.lt.s32.totalorder %s27, 1
      %s585 = scalar_select %p584, %s27, 1
      %s586 = scalar_lea.vmem %s7, %s585
      %p587 = pneg %p210
      %p588 = pneg %p207
      %p589 = scmp.lt.s32.totalorder %s27, 1
      %s590 = scalar_select %p589, %s27, 1
      %s591 = scalar_lea.vmem %s8, %s590
      %p592 = pneg %p236
      %p593 = pneg %p233
      %p594 = scmp.lt.s32.totalorder %s27, 1
      %s595 = scalar_select %p594, %s27, 1
      %s596 = scalar_lea.vmem %s9, %s595
      %p597 = pneg %p262
      %p598 = pneg %p259
      %p599 = scmp.lt.s32.totalorder %s27, 1
      %s600 = scalar_select %p599, %s27, 1
      %s601 = smul.addr %s600, 4
      %s602 = smul.addr %s601, 4
      %s603 = scalar_lea.vmem %s10, %s602
      %p604 = pneg %p288
      %p605 = pneg %p285
      %p606 = scmp.lt.s32.totalorder %s27, 1
      %s607 = scalar_select %p606, %s27, 1
      %s608 = scalar_lea.vmem %s11, %s607
      %p609 = pneg %p314
      %p610 = pneg %p311
      %p611 = scmp.lt.s32.totalorder %s27, 1
      %s612 = scalar_select %p611, %s27, 1
      %s613 = smul.addr %s612, 8
      %s614 = smul.addr %s613, 4
      %s615 = scalar_lea.vmem %s12, %s614
      %p616 = pneg %p340
      %p617 = pneg %p337
      %p618 = scmp.lt.s32.totalorder %s27, 1
      %s619 = scalar_select %p618, %s27, 1
      %s620 = scalar_lea.vmem %s13, %s619
      %p621 = pneg %p366
      %p622 = pneg %p363
      %p623 = scmp.lt.s32.totalorder %s27, 1
      %s624 = scalar_select %p623, %s27, 1
      %s625 = scalar_lea.vmem %s14, %s624
      %p626 = pneg %p392
      %p627 = pneg %p389
      %p628 = scmp.lt.s32.totalorder %s27, 1
      %s629 = scalar_select %p628, %s27, 1
      %s630 = scalar_lea.vmem %s15, %s629
      %p631 = pneg %p418
      %p632 = pneg %p415
      %p633 = pneg %p439
      %p634 = pneg %p436
      %p635 = scmp.lt.s32.totalorder %s27, 1
      %s636 = scalar_select %p635, %s27, 1
      %s637 = smul.addr %s636, 4
      %s638 = smul.addr %s637, 4
      %s639 = scalar_lea.vmem %s4, %s638
      %p640 = scmp.lt.s32.totalorder %s27, 1
      %s641 = scalar_select %p640, %s27, 1
      %s642 = scalar_lea.vmem %s5, %s641
      %p643 = scmp.lt.s32.totalorder %s27, 1
      %s644 = scalar_select %p643, %s27, 1
      %s645 = smul.addr %s644, 4
      %s646 = smul.addr %s645, 4
      %s647 = scalar_lea.vmem %s6, %s646
      %p648 = scmp.lt.s32.totalorder %s27, 1
      %s649 = scalar_select %p648, %s27, 1
      %s650 = scalar_lea.vmem %s7, %s649
      %p651 = scmp.lt.s32.totalorder %s27, 1
      %s652 = scalar_select %p651, %s27, 1
      %s653 = scalar_lea.vmem %s8, %s652
      %p654 = scmp.lt.s32.totalorder %s27, 1
      %s655 = scalar_select %p654, %s27, 1
      %s656 = scalar_lea.vmem %s9, %s655
      %p657 = scmp.lt.s32.totalorder %s27, 1
      %s658 = scalar_select %p657, %s27, 1
      %s659 = smul.addr %s658, 4
      %s660 = smul.addr %s659, 4
      %s661 = scalar_lea.vmem %s10, %s660
      %p662 = scmp.lt.s32.totalorder %s27, 1
      %s663 = scalar_select %p662, %s27, 1
      %s664 = scalar_lea.vmem %s11, %s663
      %p665 = scmp.lt.s32.totalorder %s27, 1
      %s666 = scalar_select %p665, %s27, 1
      %s667 = smul.addr %s666, 8
      %s668 = smul.addr %s667, 4
      %s669 = scalar_lea.vmem %s12, %s668
      %p670 = scmp.lt.s32.totalorder %s27, 1
      %s671 = scalar_select %p670, %s27, 1
      %s672 = scalar_lea.vmem %s13, %s671
      %p673 = scmp.lt.s32.totalorder %s27, 1
      %s674 = scalar_select %p673, %s27, 1
      %s675 = scalar_lea.vmem %s14, %s674
      %p676 = scmp.lt.s32.totalorder %s27, 1
      %s677 = scalar_select %p676, %s27, 1
      %s678 = scalar_lea.vmem %s15, %s677
      %p680 = scmp.eq.s32.totalorder %s27, 0
      // Predicated region
      $region85: #{encoder_forward.1} parent=83 // pred_check
        %p681 = pneg %p680
      $region86: #{encoder_forward.1} parent=83 // pred_check_branch
        %683 = sbr.rel (%p681) target = $region88
      $region87: #{encoder_forward.1} parent=83 // pred_region
        %v684 = vld [vmem:[%s0] sm:$0xff]
        %v685 = vld [vmem:[%s0 + $0x8] sm:$0xff]
        %v686 = vld [vmem:[%s2] sm:$0x1]
        %v687 = vld [vmem:[%s3] sm:$0x1]
        %vm688 = vcmask 261120
        %v689 = vsel %vm688, %v684, 0.0
        %690 = vadd.xlane.f32.xlu0 %v689
        %v691 = vpop.xlane.xlu0 %690
        %v692 = vsel %vm688, %v685, 0.0
        %693 = vadd.xlane.f32.xlu0 %v692
        %v694 = vpop.xlane.xlu0 %693
        %v695 = vrcp.pop 32.0
        %v696 = vmul.f32 32.0, %v695
        %v697 = vsub.f32 1.0, %v696
        %v698 = vmul.f32 %v695, %v697
        %v699 = vadd.f32 %v695, %v698
        %vm700 = vweird.f32 %v695
        %v701 = vsel %vm700, %v695, %v699
        %v702 = vmul.f32 %v691, %v701
        %v703 = vmul.f32 %v694, %v701
        %v704 = vsub.f32 %v684, %v702
        %v705 = vsub.f32 %v685, %v703
        %v706 = vmul.f32 %v704, %v704
        %v707 = vmul.f32 %v705, %v705
        %v708 = vsel %vm688, %v706, 0.0
        %709 = vadd.xlane.f32.xlu0 %v708
        %v710 = vpop.xlane.xlu0 %709
        %v711 = vsel %vm688, %v707, 0.0
        %712 = vadd.xlane.f32.xlu0 %v711
        %v713 = vpop.xlane.xlu0 %712
        %v714 = vmul.f32 %v710, %v701
        %v715 = vmul.f32 %v713, %v701
        %v716 = vadd.f32 %v714, 1e-12
        %v717 = vadd.f32 %v715, 1e-12
        %v718 = vrsqrt.pop %v716
        %v719 = vmul.f32 %v718, %v716
        %v720 = vmul.f32 %v719, %v718
        %v721 = vmul.f32 0.5, %v720
        %v722 = vsub.f32 1.5, %v721
        %v723 = vmul.f32 %v718, %v722
        %vm724 = vweird.f32 %v716
        %vm725 = vweird.f32 %v718
        %vm726 = vmor %vm724, %vm725
        %v727 = vsel %vm726, %v718, %v723
        %v728 = vrsqrt.pop %v717
        %v729 = vmul.f32 %v728, %v717
        %v730 = vmul.f32 %v729, %v728
        %v731 = vmul.f32 0.5, %v730
        %v732 = vsub.f32 1.5, %v731
        %v733 = vmul.f32 %v728, %v732
        %vm734 = vweird.f32 %v717
        %vm735 = vweird.f32 %v728
        %vm736 = vmor %vm734, %vm735
        %v737 = vsel %vm736, %v728, %v733
        %v738 = vmul.f32 %v704, %v727
        %v739 = vmul.f32 %v705, %v737
        %v741 = vperm.slane %v686, 0
        %v743 = vmul.f32 %v738, %v741
        %v744 = vmul.f32 %v739, %v741
        %v746 = vperm.slane %v687, 0
        %v748 = vadd.f32 %v743, %v746
        %v749 = vadd.f32 %v744, %v746
        %750 = vst.msk [vmem:[#allocation2] sm:$0xff] %vm688, %v748
        %751 = vst.msk [vmem:[#allocation2 + $0x8] sm:$0xff] %vm688, %v749
      $region88: #{encoder_forward.1} parent=83 // pred_fallthru
        _
      %v752 = vld [vmem:[#allocation2] sm:$0xff]
      %v753 = vld [vmem:[#allocation2 + $0x8] sm:$0xff]
      %v754 = vpack.c.bf16 %v753, %v752
      %v755 = vld [vmem:[%s639] sm:$0xf]
      %v756 = vld [vmem:[%s639 + $0x4] sm:$0xf]
      %v757 = vld [vmem:[%s639 + $0x8] sm:$0xf]
      %v758 = vld [vmem:[%s639 + $0xc] sm:$0xf]
      %v759 = vld [vmem:[%s642] sm:$0x1]
      %v761 = vperm.slane %v759, 0
      %v767 = vunpack.c.l.b16 %v755
      %v768 = vunpack.c.l.b16 %v756
      %v769 = vunpack.c.l.b16 %v757
      %v770 = vunpack.c.l.b16 %v758
      %v771 = vpack.c.b16 %v768, %v767
      %v772 = vpack.c.b16 %v770, %v769
      %vm775 = vcmask 261120
      %v777 = vsel %vm775, %v754, 0
      %779 = vmatpush.bf16.msra.mxu0 0
      %780 = vmatpush.bf16.msra.mxu0 0
      %781 = vmatpush.bf16.msra.mxu0 0
      %782 = vmatpush.bf16.msra.mxu0 0
      %783 = vmatpush.bf16.msra.mxu0 0
      %784 = vmatpush.bf16.msra.mxu0 0
      %785 = vmatpush.bf16.msra.mxu0 %v772
      %786 = vmatpush.bf16.msra.mxu0 %v771
      %787 = vmatmul.bf16.gmra.mxu0 %v777
      %v788 = vpop.f32.mrf.mxu0
      %v789 = vadd.f32 %v761, %v788
      %v790 = vpop.f32.mrf.mxu0
      %v791 = vadd.f32 %v761, %v790
      %792 = vdwg.mxu0
      %v793 = vld [vmem:[%s1] sm:$0x1]
      %v794 = vld [vmem:[%s1 + $0x1] sm:$0x1]
      %v795 = vld [vmem:[%s647] sm:$0xf]
      %v796 = vld [vmem:[%s647 + $0x4] sm:$0xf]
      %v797 = vld [vmem:[%s647 + $0x8] sm:$0xf]
      %v798 = vld [vmem:[%s647 + $0xc] sm:$0xf]
      %v799 = vld [vmem:[%s650] sm:$0x1]
      %v801 = vperm.slane %v799, 0
      %v803 = vadd.f32 %v801, 0.0
      %v804 = vpack.c.bf16 %v789, %v789
      %v805 = vpack.c.bf16 %v791, %v791
      %v807 = vunpack.c.l.b16 %v804
      %v808 = vpack.c.b16 %v807, %v807
      %809 = vrot.lane.b32.xlu0 %v808, 96
      %v810 = vpop.permute.xlu0 %809
      %vm811 = vcmask 64512
      %v813 = vsel %vm811, %v804, 0
      %v816 = vsel %vm811, %v810, 0
      %818 = vmatpush.bf16.xpose.msra.mxu0 0
      %819 = vmatpush.bf16.xpose.msra.mxu0 0
      %820 = vmatpush.bf16.xpose.msra.mxu0 0
      %821 = vmatpush.bf16.xpose.msra.mxu0 0
      %822 = vmatpush.bf16.xpose.msra.mxu0 0
      %823 = vmatpush.bf16.xpose.msra.mxu0 0
      %824 = vmatpush.bf16.xpose.msra.mxu0 0
      %825 = vmatpush.bf16.xpose.msra.mxu0 %v816
      %826 = vmatmul.bf16.gmra.mxu0 %v813
      %v827 = vpop.f32.mrf.mxu0
      %v828 = vadd.f32 0.0, %v827
      %v829 = vpop.f32.mrf.mxu0
      %830 = vdwg.mxu0
      %v832 = vunpack.c.l.b16 %v805
      %v833 = vpack.c.b16 %v832, %v832
      %834 = vrot.lane.b32.xlu0 %v833, 96
      %v835 = vpop.permute.xlu0 %834
      %v837 = vsel %vm811, %v805, 0
      %v840 = vsel %vm811, %v835, 0
      %842 = vmatpush.bf16.xpose.msra.mxu0 0
      %843 = vmatpush.bf16.xpose.msra.mxu0 0
      %844 = vmatpush.bf16.xpose.msra.mxu0 0
      %845 = vmatpush.bf16.xpose.msra.mxu0 0
      %846 = vmatpush.bf16.xpose.msra.mxu0 0
      %847 = vmatpush.bf16.xpose.msra.mxu0 0
      %848 = vmatpush.bf16.xpose.msra.mxu0 0
      %849 = vmatpush.bf16.xpose.msra.mxu0 %v840
      %850 = vmatmul.bf16.gmra.mxu0 %v837
      %v851 = vpop.f32.mrf.mxu0
      %v852 = vadd.f32 0.0, %v851
      %v853 = vpop.f32.mrf.mxu0
      %854 = vdwg.mxu0
      %v855 = vmul.f32 %v828, 0.35355338
      %v856 = vmul.f32 %v852, 0.35355338
      %v859 = vperm.slane %v793, 0
      %v860 = vperm.slane %v794, 0
      %v863 = vadd.f32 %v855, %v859
      %v864 = vadd.f32 %v856, %v860
      %v865 = vsel %vm811, %v863, -inf
      %866 = vmax.xlane.f32.xlu0 %v865
      %v867 = vpop.xlane.xlu0 %866
      %v868 = vsel %vm811, %v864, -inf
      %869 = vmax.xlane.f32.xlu0 %v868
      %v870 = vpop.xlane.xlu0 %869
      %v871 = vsub.f32 %v863, %v867
      %v872 = vsub.f32 %v864, %v870
      %v873 = vmul.f32 %v871, 1.442695
      %v874 = vpow.pop %v873
      %v875 = vmul.f32 %v872, 1.442695
      %v876 = vpow.pop %v875
      %v877 = vsel %vm811, %v874, 0.0
      %878 = vadd.xlane.f32.xlu0 %v877
      %v879 = vpop.xlane.xlu0 %878
      %v880 = vsel %vm811, %v876, 0.0
      %881 = vadd.xlane.f32.xlu0 %v880
      %v882 = vpop.xlane.xlu0 %881
      %v883 = vrcp.pop %v879
      %v884 = vrcp.pop %v882
      %v885 = vmul.f32 %v874, %v883
      %v886 = vmul.f32 %v876, %v884
      %v887 = vpack.c.bf16 %v885, %v885
      %v888 = vpack.c.bf16 %v886, %v886
      %889 = vrot.lane.b32.xlu0 %v808, 64
      %v890 = vpop.permute.xlu0 %889
      %v892 = vsel %vm811, %v887, 0
      %vm894 = vcmask 1043456
      %v896 = vsel %vm894, %v890, 0
      %898 = vmatpush.bf16.msra.mxu0 0
      %899 = vmatpush.bf16.msra.mxu0 0
      %900 = vmatpush.bf16.msra.mxu0 0
      %901 = vmatpush.bf16.msra.mxu0 0
      %902 = vmatpush.bf16.msra.mxu0 0
      %903 = vmatpush.bf16.msra.mxu0 0
      %904 = vmatpush.bf16.msra.mxu0 0
      %905 = vmatpush.bf16.msra.mxu0 %v896
      %906 = vmatmul.bf16.gmra.mxu0 %v892
      %v907 = vpop.f32.mrf.mxu0
      %v908 = vadd.f32 0.0, %v907
      %v909 = vpop.f32.mrf.mxu0
      %910 = vdwg.mxu0
      %911 = vrot.lane.b32.xlu0 %v833, 64
      %v912 = vpop.permute.xlu0 %911
      %v914 = vsel %vm811, %v888, 0
      %v917 = vsel %vm894, %v912, 0
      %919 = vmatpush.bf16.msra.mxu0 0
      %920 = vmatpush.bf16.msra.mxu0 0
      %921 = vmatpush.bf16.msra.mxu0 0
      %922 = vmatpush.bf16.msra.mxu0 0
      %923 = vmatpush.bf16.msra.mxu0 0
      %924 = vmatpush.bf16.msra.mxu0 0
      %925 = vmatpush.bf16.msra.mxu0 0
      %926 = vmatpush.bf16.msra.mxu0 %v917
      %927 = vmatmul.bf16.gmra.mxu0 %v914
      %v928 = vpop.f32.mrf.mxu0
      %v929 = vadd.f32 0.0, %v928
      %v930 = vpop.f32.mrf.mxu0
      %931 = vdwg.mxu0
      %v932 = vpack.c.bf16 %v929, %v908
      %v934 = vsel %vm811, %v932, 0
      %v937 = vsel %vm894, %v795, 0
      %939 = vmatpush.bf16.msra.mxu0 0
      %940 = vmatpush.bf16.msra.mxu0 0
      %941 = vmatpush.bf16.msra.mxu0 0
      %942 = vmatpush.bf16.msra.mxu0 0
      %943 = vmatpush.bf16.msra.mxu0 0
      %944 = vmatpush.bf16.msra.mxu0 0
      %945 = vmatpush.bf16.msra.mxu0 0
      %946 = vmatpush.bf16.msra.mxu0 %v937
      %947 = vmatmul.bf16.gmra.mxu0 %v934
      %v948 = vpop.f32.mrf.mxu0
      %v949 = vadd.f32 0.0, %v948
      %v950 = vpop.f32.mrf.mxu0
      %v951 = vadd.f32 0.0, %v950
      %952 = vdwg.mxu0
      %v953 = vadd.f32 %v803, %v949
      %v954 = vadd.f32 %v803, %v951
      %955 = vrot.lane.b32.xlu0 %v808, 120
      %v956 = vpop.permute.xlu0 %955
      %957 = vrot.lane.b32.xlu0 %v808, 88
      %v958 = vpop.permute.xlu0 %957
      %v960 = vsel %vm811, %v956, 0
      %v963 = vsel %vm811, %v958, 0
      %965 = vmatpush.bf16.xpose.msra.mxu0 0
      %966 = vmatpush.bf16.xpose.msra.mxu0 0
      %967 = vmatpush.bf16.xpose.msra.mxu0 0
      %968 = vmatpush.bf16.xpose.msra.mxu0 0
      %969 = vmatpush.bf16.xpose.msra.mxu0 0
      %970 = vmatpush.bf16.xpose.msra.mxu0 0
      %971 = vmatpush.bf16.xpose.msra.mxu0 0
      %972 = vmatpush.bf16.xpose.msra.mxu0 %v963
      %973 = vmatmul.bf16.gmra.mxu0 %v960
      %v974 = vpop.f32.mrf.mxu0
      %v975 = vadd.f32 0.0, %v974
      %v976 = vpop.f32.mrf.mxu0
      %977 = vdwg.mxu0
      %978 = vrot.lane.b32.xlu0 %v833, 120
      %v979 = vpop.permute.xlu0 %978
      %980 = vrot.lane.b32.xlu0 %v833, 88
      %v981 = vpop.permute.xlu0 %980
      %v983 = vsel %vm811, %v979, 0
      %v986 = vsel %vm811, %v981, 0
      %988 = vmatpush.bf16.xpose.msra.mxu0 0
      %989 = vmatpush.bf16.xpose.msra.mxu0 0
      %990 = vmatpush.bf16.xpose.msra.mxu0 0
      %991 = vmatpush.bf16.xpose.msra.mxu0 0
      %992 = vmatpush.bf16.xpose.msra.mxu0 0
      %993 = vmatpush.bf16.xpose.msra.mxu0 0
      %994 = vmatpush.bf16.xpose.msra.mxu0 0
      %995 = vmatpush.bf16.xpose.msra.mxu0 %v986
      %996 = vmatmul.bf16.gmra.mxu0 %v983
      %v997 = vpop.f32.mrf.mxu0
      %v998 = vadd.f32 0.0, %v997
      %v999 = vpop.f32.mrf.mxu0
      %1000 = vdwg.mxu0
      %v1001 = vmul.f32 %v975, 0.35355338
      %v1002 = vmul.f32 %v998, 0.35355338
      %v1003 = vadd.f32 %v1001, %v859
      %v1004 = vadd.f32 %v1002, %v860
      %v1005 = vsel %vm811, %v1003, -inf
      %1006 = vmax.xlane.f32.xlu0 %v1005
      %v1007 = vpop.xlane.xlu0 %1006
      %v1008 = vsel %vm811, %v1004, -inf
      %1009 = vmax.xlane.f32.xlu0 %v1008
      %v1010 = vpop.xlane.xlu0 %1009
      %v1011 = vsub.f32 %v1003, %v1007
      %v1012 = vsub.f32 %v1004, %v1010
      %v1013 = vmul.f32 %v1011, 1.442695
      %v1014 = vpow.pop %v1013
      %v1015 = vmul.f32 %v1012, 1.442695
      %v1016 = vpow.pop %v1015
      %v1017 = vsel %vm811, %v1014, 0.0
      %1018 = vadd.xlane.f32.xlu0 %v1017
      %v1019 = vpop.xlane.xlu0 %1018
      %v1020 = vsel %vm811, %v1016, 0.0
      %1021 = vadd.xlane.f32.xlu0 %v1020
      %v1022 = vpop.xlane.xlu0 %1021
      %v1023 = vrcp.pop %v1019
      %v1024 = vrcp.pop %v1022
      %v1025 = vmul.f32 %v1014, %v1023
      %v1026 = vmul.f32 %v1016, %v1024
      %v1027 = vpack.c.bf16 %v1025, %v1025
      %v1028 = vpack.c.bf16 %v1026, %v1026
      %1029 = vrot.lane.b32.xlu0 %v808, 56
      %v1030 = vpop.permute.xlu0 %1029
      %v1032 = vsel %vm811, %v1027, 0
      %v1035 = vsel %vm894, %v1030, 0
      %1037 = vmatpush.bf16.msra.mxu0 0
      %1038 = vmatpush.bf16.msra.mxu0 0
      %1039 = vmatpush.bf16.msra.mxu0 0
      %1040 = vmatpush.bf16.msra.mxu0 0
      %1041 = vmatpush.bf16.msra.mxu0 0
      %1042 = vmatpush.bf16.msra.mxu0 0
      %1043 = vmatpush.bf16.msra.mxu0 0
      %1044 = vmatpush.bf16.msra.mxu0 %v1035
      %1045 = vmatmul.bf16.gmra.mxu0 %v1032
      %v1046 = vpop.f32.mrf.mxu0
      %v1047 = vadd.f32 0.0, %v1046
      %v1048 = vpop.f32.mrf.mxu0
      %1049 = vdwg.mxu0
      %1050 = vrot.lane.b32.xlu0 %v833, 56
      %v1051 = vpop.permute.xlu0 %1050
      %v1053 = vsel %vm811, %v1028, 0
      %v1056 = vsel %vm894, %v1051, 0
      %1058 = vmatpush.bf16.msra.mxu0 0
      %1059 = vmatpush.bf16.msra.mxu0 0
      %1060 = vmatpush.bf16.msra.mxu0 0
      %1061 = vmatpush.bf16.msra.mxu0 0
      %1062 = vmatpush.bf16.msra.mxu0 0
      %1063 = vmatpush.bf16.msra.mxu0 0
      %1064 = vmatpush.bf16.msra.mxu0 0
      %1065 = vmatpush.bf16.msra.mxu0 %v1056
      %1066 = vmatmul.bf16.gmra.mxu0 %v1053
      %v1067 = vpop.f32.mrf.mxu0
      %v1068 = vadd.f32 0.0, %v1067
      %v1069 = vpop.f32.mrf.mxu0
      %1070 = vdwg.mxu0
      %v1071 = vpack.c.bf16 %v1068, %v1047
      %v1073 = vsel %vm811, %v1071, 0
      %v1076 = vsel %vm894, %v796, 0
      %1078 = vmatpush.bf16.msra.mxu0 0
      %1079 = vmatpush.bf16.msra.mxu0 0
      %1080 = vmatpush.bf16.msra.mxu0 0
      %1081 = vmatpush.bf16.msra.mxu0 0
      %1082 = vmatpush.bf16.msra.mxu0 0
      %1083 = vmatpush.bf16.msra.mxu0 0
      %1084 = vmatpush.bf16.msra.mxu0 0
      %1085 = vmatpush.bf16.msra.mxu0 %v1076
      %1086 = vmatmul.bf16.gmra.mxu0 %v1073
      %v1087 = vpop.f32.mrf.mxu0
      %v1088 = vadd.f32 0.0, %v1087
      %v1089 = vpop.f32.mrf.mxu0
      %v1090 = vadd.f32 0.0, %v1089
      %1091 = vdwg.mxu0
      %v1092 = vadd.f32 %v953, %v1088
      %v1093 = vadd.f32 %v954, %v1090
      %1094 = vrot.lane.b32.xlu0 %v808, 112
      %v1095 = vpop.permute.xlu0 %1094
      %1096 = vrot.lane.b32.xlu0 %v808, 80
      %v1097 = vpop.permute.xlu0 %1096
      %v1099 = vsel %vm811, %v1095, 0
      %v1102 = vsel %vm811, %v1097, 0
      %1104 = vmatpush.bf16.xpose.msra.mxu0 0
      %1105 = vmatpush.bf16.xpose.msra.mxu0 0
      %1106 = vmatpush.bf16.xpose.msra.mxu0 0
      %1107 = vmatpush.bf16.xpose.msra.mxu0 0
      %1108 = vmatpush.bf16.xpose.msra.mxu0 0
      %1109 = vmatpush.bf16.xpose.msra.mxu0 0
      %1110 = vmatpush.bf16.xpose.msra.mxu0 0
      %1111 = vmatpush.bf16.xpose.msra.mxu0 %v1102
      %1112 = vmatmul.bf16.gmra.mxu0 %v1099
      %v1113 = vpop.f32.mrf.mxu0
      %v1114 = vadd.f32 0.0, %v1113
      %v1115 = vpop.f32.mrf.mxu0
      %1116 = vdwg.mxu0
      %1117 = vrot.lane.b32.xlu0 %v833, 112
      %v1118 = vpop.permute.xlu0 %1117
      %1119 = vrot.lane.b32.xlu0 %v833, 80
      %v1120 = vpop.permute.xlu0 %1119
      %v1122 = vsel %vm811, %v1118, 0
      %v1125 = vsel %vm811, %v1120, 0
      %1127 = vmatpush.bf16.xpose.msra.mxu0 0
      %1128 = vmatpush.bf16.xpose.msra.mxu0 0
      %1129 = vmatpush.bf16.xpose.msra.mxu0 0
      %1130 = vmatpush.bf16.xpose.msra.mxu0 0
      %1131 = vmatpush.bf16.xpose.msra.mxu0 0
      %1132 = vmatpush.bf16.xpose.msra.mxu0 0
      %1133 = vmatpush.bf16.xpose.msra.mxu0 0
      %1134 = vmatpush.bf16.xpose.msra.mxu0 %v1125
      %1135 = vmatmul.bf16.gmra.mxu0 %v1122
      %v1136 = vpop.f32.mrf.mxu0
      %v1137 = vadd.f32 0.0, %v1136
      %v1138 = vpop.f32.mrf.mxu0
      %1139 = vdwg.mxu0
      %v1140 = vmul.f32 %v1114, 0.35355338
      %v1141 = vmul.f32 %v1137, 0.35355338
      %v1142 = vadd.f32 %v1140, %v859
      %v1143 = vadd.f32 %v1141, %v860
      %v1144 = vsel %vm811, %v1142, -inf
      %1145 = vmax.xlane.f32.xlu0 %v1144
      %v1146 = vpop.xlane.xlu0 %1145
      %v1147 = vsel %vm811, %v1143, -inf
      %1148 = vmax.xlane.f32.xlu0 %v1147
      %v1149 = vpop.xlane.xlu0 %1148
      %v1150 = vsub.f32 %v1142, %v1146
      %v1151 = vsub.f32 %v1143, %v1149
      %v1152 = vmul.f32 %v1150, 1.442695
      %v1153 = vpow.pop %v1152
      %v1154 = vmul.f32 %v1151, 1.442695
      %v1155 = vpow.pop %v1154
      %v1156 = vsel %vm811, %v1153, 0.0
      %1157 = vadd.xlane.f32.xlu0 %v1156
      %v1158 = vpop.xlane.xlu0 %1157
      %v1159 = vsel %vm811, %v1155, 0.0
      %1160 = vadd.xlane.f32.xlu0 %v1159
      %v1161 = vpop.xlane.xlu0 %1160
      %v1162 = vrcp.pop %v1158
      %v1163 = vrcp.pop %v1161
      %v1164 = vmul.f32 %v1153, %v1162
      %v1165 = vmul.f32 %v1155, %v1163
      %v1166 = vpack.c.bf16 %v1164, %v1164
      %v1167 = vpack.c.bf16 %v1165, %v1165
      %1168 = vrot.lane.b32.xlu0 %v808, 48
      %v1169 = vpop.permute.xlu0 %1168
      %v1171 = vsel %vm811, %v1166, 0
      %v1174 = vsel %vm894, %v1169, 0
      %1176 = vmatpush.bf16.msra.mxu0 0
      %1177 = vmatpush.bf16.msra.mxu0 0
      %1178 = vmatpush.bf16.msra.mxu0 0
      %1179 = vmatpush.bf16.msra.mxu0 0
      %1180 = vmatpush.bf16.msra.mxu0 0
      %1181 = vmatpush.bf16.msra.mxu0 0
      %1182 = vmatpush.bf16.msra.mxu0 0
      %1183 = vmatpush.bf16.msra.mxu0 %v1174
      %1184 = vmatmul.bf16.gmra.mxu0 %v1171
      %v1185 = vpop.f32.mrf.mxu0
      %v1186 = vadd.f32 0.0, %v1185
      %v1187 = vpop.f32.mrf.mxu0
      %1188 = vdwg.mxu0
      %1189 = vrot.lane.b32.xlu0 %v833, 48
      %v1190 = vpop.permute.xlu0 %1189
      %v1192 = vsel %vm811, %v1167, 0
      %v1195 = vsel %vm894, %v1190, 0
      %1197 = vmatpush.bf16.msra.mxu0 0
      %1198 = vmatpush.bf16.msra.mxu0 0
      %1199 = vmatpush.bf16.msra.mxu0 0
      %1200 = vmatpush.bf16.msra.mxu0 0
      %1201 = vmatpush.bf16.msra.mxu0 0
      %1202 = vmatpush.bf16.msra.mxu0 0
      %1203 = vmatpush.bf16.msra.mxu0 0
      %1204 = vmatpush.bf16.msra.mxu0 %v1195
      %1205 = vmatmul.bf16.gmra.mxu0 %v1192
      %v1206 = vpop.f32.mrf.mxu0
      %v1207 = vadd.f32 0.0, %v1206
      %v1208 = vpop.f32.mrf.mxu0
      %1209 = vdwg.mxu0
      %v1210 = vpack.c.bf16 %v1207, %v1186
      %v1212 = vsel %vm811, %v1210, 0
      %v1215 = vsel %vm894, %v797, 0
      %1217 = vmatpush.bf16.msra.mxu0 0
      %1218 = vmatpush.bf16.msra.mxu0 0
      %1219 = vmatpush.bf16.msra.mxu0 0
      %1220 = vmatpush.bf16.msra.mxu0 0
      %1221 = vmatpush.bf16.msra.mxu0 0
      %1222 = vmatpush.bf16.msra.mxu0 0
      %1223 = vmatpush.bf16.msra.mxu0 0
      %1224 = vmatpush.bf16.msra.mxu0 %v1215
      %1225 = vmatmul.bf16.gmra.mxu0 %v1212
      %v1226 = vpop.f32.mrf.mxu0
      %v1227 = vadd.f32 0.0, %v1226
      %v1228 = vpop.f32.mrf.mxu0
      %v1229 = vadd.f32 0.0, %v1228
      %1230 = vdwg.mxu0
      %v1231 = vadd.f32 %v1092, %v1227
      %v1232 = vadd.f32 %v1093, %v1229
      %1233 = vrot.lane.b32.xlu0 %v808, 104
      %v1234 = vpop.permute.xlu0 %1233
      %1235 = vrot.lane.b32.xlu0 %v808, 72
      %v1236 = vpop.permute.xlu0 %1235
      %v1238 = vsel %vm811, %v1234, 0
      %v1241 = vsel %vm811, %v1236, 0
      %1243 = vmatpush.bf16.xpose.msra.mxu0 0
      %1244 = vmatpush.bf16.xpose.msra.mxu0 0
      %1245 = vmatpush.bf16.xpose.msra.mxu0 0
      %1246 = vmatpush.bf16.xpose.msra.mxu0 0
      %1247 = vmatpush.bf16.xpose.msra.mxu0 0
      %1248 = vmatpush.bf16.xpose.msra.mxu0 0
      %1249 = vmatpush.bf16.xpose.msra.mxu0 0
      %1250 = vmatpush.bf16.xpose.msra.mxu0 %v1241
      %1251 = vmatmul.bf16.gmra.mxu0 %v1238
      %v1252 = vpop.f32.mrf.mxu0
      %v1253 = vadd.f32 0.0, %v1252
      %v1254 = vpop.f32.mrf.mxu0
      %1255 = vdwg.mxu0
      %1256 = vrot.lane.b32.xlu0 %v833, 104
      %v1257 = vpop.permute.xlu0 %1256
      %1258 = vrot.lane.b32.xlu0 %v833, 72
      %v1259 = vpop.permute.xlu0 %1258
      %v1261 = vsel %vm811, %v1257, 0
      %v1264 = vsel %vm811, %v1259, 0
      %1266 = vmatpush.bf16.xpose.msra.mxu0 0
      %1267 = vmatpush.bf16.xpose.msra.mxu0 0
      %1268 = vmatpush.bf16.xpose.msra.mxu0 0
      %1269 = vmatpush.bf16.xpose.msra.mxu0 0
      %1270 = vmatpush.bf16.xpose.msra.mxu0 0
      %1271 = vmatpush.bf16.xpose.msra.mxu0 0
      %1272 = vmatpush.bf16.xpose.msra.mxu0 0
      %1273 = vmatpush.bf16.xpose.msra.mxu0 %v1264
      %1274 = vmatmul.bf16.gmra.mxu0 %v1261
      %v1275 = vpop.f32.mrf.mxu0
      %v1276 = vadd.f32 0.0, %v1275
      %v1277 = vpop.f32.mrf.mxu0
      %1278 = vdwg.mxu0
      %v1279 = vmul.f32 %v1253, 0.35355338
      %v1280 = vmul.f32 %v1276, 0.35355338
      %v1281 = vadd.f32 %v1279, %v859
      %v1282 = vadd.f32 %v1280, %v860
      %v1283 = vsel %vm811, %v1281, -inf
      %1284 = vmax.xlane.f32.xlu0 %v1283
      %v1285 = vpop.xlane.xlu0 %1284
      %v1286 = vsel %vm811, %v1282, -inf
      %1287 = vmax.xlane.f32.xlu0 %v1286
      %v1288 = vpop.xlane.xlu0 %1287
      %v1289 = vsub.f32 %v1281, %v1285
      %v1290 = vsub.f32 %v1282, %v1288
      %v1291 = vmul.f32 %v1289, 1.442695
      %v1292 = vpow.pop %v1291
      %v1293 = vmul.f32 %v1290, 1.442695
      %v1294 = vpow.pop %v1293
      %v1295 = vsel %vm811, %v1292, 0.0
      %1296 = vadd.xlane.f32.xlu0 %v1295
      %v1297 = vpop.xlane.xlu0 %1296
      %v1298 = vsel %vm811, %v1294, 0.0
      %1299 = vadd.xlane.f32.xlu0 %v1298
      %v1300 = vpop.xlane.xlu0 %1299
      %v1301 = vrcp.pop %v1297
      %v1302 = vrcp.pop %v1300
      %v1303 = vmul.f32 %v1292, %v1301
      %v1304 = vmul.f32 %v1294, %v1302
      %v1305 = vpack.c.bf16 %v1303, %v1303
      %v1306 = vpack.c.bf16 %v1304, %v1304
      %1307 = vrot.lane.b32.xlu0 %v808, 40
      %v1308 = vpop.permute.xlu0 %1307
      %v1310 = vsel %vm811, %v1305, 0
      %v1313 = vsel %vm894, %v1308, 0
      %1315 = vmatpush.bf16.msra.mxu0 0
      %1316 = vmatpush.bf16.msra.mxu0 0
      %1317 = vmatpush.bf16.msra.mxu0 0
      %1318 = vmatpush.bf16.msra.mxu0 0
      %1319 = vmatpush.bf16.msra.mxu0 0
      %1320 = vmatpush.bf16.msra.mxu0 0
      %1321 = vmatpush.bf16.msra.mxu0 0
      %1322 = vmatpush.bf16.msra.mxu0 %v1313
      %1323 = vmatmul.bf16.gmra.mxu0 %v1310
      %v1324 = vpop.f32.mrf.mxu0
      %v1325 = vadd.f32 0.0, %v1324
      %v1326 = vpop.f32.mrf.mxu0
      %1327 = vdwg.mxu0
      %1328 = vrot.lane.b32.xlu0 %v833, 40
      %v1329 = vpop.permute.xlu0 %1328
      %v1331 = vsel %vm811, %v1306, 0
      %v1334 = vsel %vm894, %v1329, 0
      %1336 = vmatpush.bf16.msra.mxu0 0
      %1337 = vmatpush.bf16.msra.mxu0 0
      %1338 = vmatpush.bf16.msra.mxu0 0
      %1339 = vmatpush.bf16.msra.mxu0 0
      %1340 = vmatpush.bf16.msra.mxu0 0
      %1341 = vmatpush.bf16.msra.mxu0 0
      %1342 = vmatpush.bf16.msra.mxu0 0
      %1343 = vmatpush.bf16.msra.mxu0 %v1334
      %1344 = vmatmul.bf16.gmra.mxu0 %v1331
      %v1345 = vpop.f32.mrf.mxu0
      %v1346 = vadd.f32 0.0, %v1345
      %v1347 = vpop.f32.mrf.mxu0
      %1348 = vdwg.mxu0
      %v1349 = vpack.c.bf16 %v1346, %v1325
      %v1351 = vsel %vm811, %v1349, 0
      %v1354 = vsel %vm894, %v798, 0
      %1356 = vmatpush.bf16.msra.mxu0 0
      %1357 = vmatpush.bf16.msra.mxu0 0
      %1358 = vmatpush.bf16.msra.mxu0 0
      %1359 = vmatpush.bf16.msra.mxu0 0
      %1360 = vmatpush.bf16.msra.mxu0 0
      %1361 = vmatpush.bf16.msra.mxu0 0
      %1362 = vmatpush.bf16.msra.mxu0 0
      %1363 = vmatpush.bf16.msra.mxu0 %v1354
      %1364 = vmatmul.bf16.gmra.mxu0 %v1351
      %v1365 = vpop.f32.mrf.mxu0
      %v1366 = vadd.f32 0.0, %v1365
      %v1367 = vpop.f32.mrf.mxu0
      %v1368 = vadd.f32 0.0, %v1367
      %1369 = vdwg.mxu0
      %v1370 = vadd.f32 %v1231, %v1366
      %v1371 = vadd.f32 %v1232, %v1368
      %v1372 = vadd.f32 %v752, %v1370
      %v1373 = vadd.f32 %v753, %v1371
      %v1374 = vld [vmem:[%s653] sm:$0x1]
      %v1375 = vld [vmem:[%s656] sm:$0x1]
      %v1376 = vsel %vm775, %v1372, 0.0
      %1377 = vadd.xlane.f32.xlu0 %v1376
      %v1378 = vpop.xlane.xlu0 %1377
      %v1379 = vsel %vm775, %v1373, 0.0
      %1380 = vadd.xlane.f32.xlu0 %v1379
      %v1381 = vpop.xlane.xlu0 %1380
      %v1382 = vrcp.pop 32.0
      %v1383 = vmul.f32 32.0, %v1382
      %v1384 = vsub.f32 1.0, %v1383
      %v1385 = vmul.f32 %v1382, %v1384
      %v1386 = vadd.f32 %v1382, %v1385
      %vm1387 = vweird.f32 %v1382
      %v1388 = vsel %vm1387, %v1382, %v1386
      %v1389 = vmul.f32 %v1378, %v1388
      %v1390 = vmul.f32 %v1381, %v1388
      %v1391 = vsub.f32 %v1372, %v1389
      %v1392 = vsub.f32 %v1373, %v1390
      %v1393 = vmul.f32 %v1391, %v1391
      %v1394 = vmul.f32 %v1392, %v1392
      %v1395 = vsel %vm775, %v1393, 0.0
      %1396 = vadd.xlane.f32.xlu0 %v1395
      %v1397 = vpop.xlane.xlu0 %1396
      %v1398 = vsel %vm775, %v1394, 0.0
      %1399 = vadd.xlane.f32.xlu0 %v1398
      %v1400 = vpop.xlane.xlu0 %1399
      %v1401 = vmul.f32 %v1397, %v1388
      %v1402 = vmul.f32 %v1400, %v1388
      %v1403 = vadd.f32 %v1401, 1e-12
      %v1404 = vadd.f32 %v1402, 1e-12
      %v1405 = vrsqrt.pop %v1403
      %v1406 = vmul.f32 %v1405, %v1403
      %v1407 = vmul.f32 %v1406, %v1405
      %v1408 = vmul.f32 0.5, %v1407
      %v1409 = vsub.f32 1.5, %v1408
      %v1410 = vmul.f32 %v1405, %v1409
      %vm1411 = vweird.f32 %v1403
      %vm1412 = vweird.f32 %v1405
      %vm1413 = vmor %vm1411, %vm1412
      %v1414 = vsel %vm1413, %v1405, %v1410
      %v1415 = vrsqrt.pop %v1404
      %v1416 = vmul.f32 %v1415, %v1404
      %v1417 = vmul.f32 %v1416, %v1415
      %v1418 = vmul.f32 0.5, %v1417
      %v1419 = vsub.f32 1.5, %v1418
      %v1420 = vmul.f32 %v1415, %v1419
      %vm1421 = vweird.f32 %v1404
      %vm1422 = vweird.f32 %v1415
      %vm1423 = vmor %vm1421, %vm1422
      %v1424 = vsel %vm1423, %v1415, %v1420
      %v1425 = vmul.f32 %v1391, %v1414
      %v1426 = vmul.f32 %v1392, %v1424
      %v1428 = vperm.slane %v1374, 0
      %v1430 = vmul.f32 %v1425, %v1428
      %v1431 = vmul.f32 %v1426, %v1428
      %v1433 = vperm.slane %v1375, 0
      %v1435 = vadd.f32 %v1430, %v1433
      %v1436 = vadd.f32 %v1431, %v1433
      %v1437 = vpack.c.bf16 %v1436, %v1435
      %v1438 = vld [vmem:[%s661] sm:$0xf]
      %v1439 = vld [vmem:[%s661 + $0x4] sm:$0xf]
      %v1440 = vld [vmem:[%s661 + $0x8] sm:$0xf]
      %v1441 = vld [vmem:[%s661 + $0xc] sm:$0xf]
      %v1442 = vld [vmem:[%s664] sm:$0x1]
      %v1444 = vperm.slane %v1442, 0
      %v1450 = vunpack.c.l.b16 %v1438
      %v1451 = vunpack.c.l.b16 %v1439
      %v1452 = vunpack.c.l.b16 %v1440
      %v1453 = vunpack.c.l.b16 %v1441
      %v1454 = vpack.c.b16 %v1451, %v1450
      %v1455 = vpack.c.b16 %v1453, %v1452
      %v1459 = vsel %vm775, %v1437, 0
      %1461 = vmatpush.bf16.msra.mxu0 0
      %1462 = vmatpush.bf16.msra.mxu0 0
      %1463 = vmatpush.bf16.msra.mxu0 0
      %1464 = vmatpush.bf16.msra.mxu0 0
      %1465 = vmatpush.bf16.msra.mxu0 0
      %1466 = vmatpush.bf16.msra.mxu0 0
      %1467 = vmatpush.bf16.msra.mxu0 %v1455
      %1468 = vmatpush.bf16.msra.mxu0 %v1454
      %1469 = vmatmul.bf16.gmra.mxu0 %v1459
      %v1470 = vpop.f32.mrf.mxu0
      %v1471 = vadd.f32 %v1444, %v1470
      %v1472 = vpop.f32.mrf.mxu0
      %v1473 = vadd.f32 %v1444, %v1472
      %1474 = vdwg.mxu0
      %v1475 = vmul.f32 %v1471, 0.5
      %v1476 = vmul.f32 %v1473, 0.5
      %v1477 = vmul.f32 %v1471, 0.70710677
      %v1478 = vmul.f32 %v1473, 0.70710677
      %v1479 = vmul.f32 %v1477, %v1477
      %v1480 = vmin.f32 16.0, %v1479
      %v1481 = vmul.f32 %v1480, 2.1237322e-06
      %v1482 = vadd.f32 %v1481, 0.00028619796
      %v1483 = vmul.f32 %v1480, %v1482
      %v1484 = vadd.f32 %v1483, 0.0036580483
      %v1485 = vmul.f32 %v1480, %v1484
      %v1486 = vadd.f32 %v1485, 0.05243302
      %v1487 = vmul.f32 %v1480, %v1486
      %v1488 = vadd.f32 %v1487, 0.18741608
      %v1489 = vmul.f32 %v1480, %v1488
      %v1490 = vadd.f32 %v1489, 1.1283791
      %v1491 = vmul.f32 %v1477, %v1490
      %v1492 = vmul.f32 %v1480, 3.8918573e-05
      %v1493 = vadd.f32 %v1492, 0.001143296
      %v1494 = vmul.f32 %v1480, %v1493
      %v1495 = vadd.f32 %v1494, 0.014752088
      %v1496 = vmul.f32 %v1480, %v1495
      %v1497 = vadd.f32 %v1496, 0.112945676
      %v1498 = vmul.f32 %v1480, %v1497
      %v1499 = vadd.f32 %v1498, 0.4994258
      %v1500 = vmul.f32 %v1480, %v1499
      %v1501 = vadd.f32 %v1500, 1.0
      %v1502 = vrcp.pop %v1501
      %v1503 = vmul.f32 %v1501, %v1502
      %v1504 = vsub.f32 1.0, %v1503
      %v1505 = vmul.f32 %v1502, %v1504
      %v1506 = vadd.f32 %v1502, %v1505
      %vm1507 = vweird.f32 %v1501
      %vm1508 = vweird.f32 %v1502
      %vm1509 = vmor %vm1507, %vm1508
      %v1510 = vsel %vm1509, %v1502, %v1506
      %v1511 = vand.u32 2147483647, %v1501
      %vm1512 = vcmp.eq.f32.partialorder %v1511, 8.507059e+37
      %v1513 = vand.u32 %v1501, 2147483648
      %v1514 = vor.u32 1.1754944e-38, %v1513
      %v1515 = vsel %vm1512, %v1514, %v1510
      %v1516 = vmul.f32 %v1491, %v1515
      %v1517 = vmin.f32 %v1516, 1.0
      %v1518 = vmax.f32 %v1517, -1.0
      %v1519 = vmul.f32 %v1478, %v1478
      %v1520 = vmin.f32 16.0, %v1519
      %v1521 = vmul.f32 %v1520, 2.1237322e-06
      %v1522 = vadd.f32 %v1521, 0.00028619796
      %v1523 = vmul.f32 %v1520, %v1522
      %v1524 = vadd.f32 %v1523, 0.0036580483
      %v1525 = vmul.f32 %v1520, %v1524
      %v1526 = vadd.f32 %v1525, 0.05243302
      %v1527 = vmul.f32 %v1520, %v1526
      %v1528 = vadd.f32 %v1527, 0.18741608
      %v1529 = vmul.f32 %v1520, %v1528
      %v1530 = vadd.f32 %v1529, 1.1283791
      %v1531 = vmul.f32 %v1478, %v1530
      %v1532 = vmul.f32 %v1520, 3.8918573e-05
      %v1533 = vadd.f32 %v1532, 0.001143296
      %v1534 = vmul.f32 %v1520, %v1533
      %v1535 = vadd.f32 %v1534, 0.014752088
      %v1536 = vmul.f32 %v1520, %v1535
      %v1537 = vadd.f32 %v1536, 0.112945676
      %v1538 = vmul.f32 %v1520, %v1537
      %v1539 = vadd.f32 %v1538, 0.4994258
      %v1540 = vmul.f32 %v1520, %v1539
      %v1541 = vadd.f32 %v1540, 1.0
      %v1542 = vrcp.pop %v1541
      %v1543 = vmul.f32 %v1541, %v1542
      %v1544 = vsub.f32 1.0, %v1543
      %v1545 = vmul.f32 %v1542, %v1544
      %v1546 = vadd.f32 %v1542, %v1545
      %vm1547 = vweird.f32 %v1541
      %vm1548 = vweird.f32 %v1542
      %vm1549 = vmor %vm1547, %vm1548
      %v1550 = vsel %vm1549, %v1542, %v1546
      %v1551 = vand.u32 2147483647, %v1541
      %vm1552 = vcmp.eq.f32.partialorder %v1551, 8.507059e+37
      %v1553 = vand.u32 %v1541, 2147483648
      %v1554 = vor.u32 1.1754944e-38, %v1553
      %v1555 = vsel %vm1552, %v1554, %v1550
      %v1556 = vmul.f32 %v1531, %v1555
      %v1557 = vmin.f32 %v1556, 1.0
      %v1558 = vmax.f32 %v1557, -1.0
      %v1559 = vadd.f32 %v1518, 1.0
      %v1560 = vadd.f32 %v1558, 1.0
      %v1561 = vmul.f32 %v1475, %v1559
      %v1562 = vmul.f32 %v1476, %v1560
      %v1563 = vpack.c.bf16 %v1562, %v1561
      %v1564 = vld [vmem:[%s669] sm:$0xf]
      %v1565 = vld [vmem:[%s669 + $0x4] sm:$0xf]
      %v1566 = vld [vmem:[%s669 + $0x8] sm:$0xf]
      %v1567 = vld [vmem:[%s669 + $0xc] sm:$0xf]
      %v1568 = vld [vmem:[%s669 + $0x10] sm:$0xf]
      %v1569 = vld [vmem:[%s669 + $0x14] sm:$0xf]
      %v1570 = vld [vmem:[%s669 + $0x18] sm:$0xf]
      %v1571 = vld [vmem:[%s669 + $0x1c] sm:$0xf]
      %v1572 = vld [vmem:[%s672] sm:$0x1]
      %v1574 = vperm.slane %v1572, 0
      %v1584 = vunpack.c.l.b16 %v1564
      %v1585 = vunpack.c.l.b16 %v1565
      %v1586 = vunpack.c.l.b16 %v1566
      %v1587 = vunpack.c.l.b16 %v1567
      %v1588 = vunpack.c.l.b16 %v1568
      %v1589 = vunpack.c.l.b16 %v1569
      %v1590 = vunpack.c.l.b16 %v1570
      %v1591 = vunpack.c.l.b16 %v1571
      %v1592 = vpack.c.b16 %v1585, %v1584
      %v1593 = vpack.c.b16 %v1587, %v1586
      %v1594 = vpack.c.b16 %v1589, %v1588
      %v1595 = vpack.c.b16 %v1591, %v1590
      %vm1600 = vcmask 523264
      %v1602 = vsel %vm1600, %v1563, 0
      %1604 = vmatpush.bf16.msra.mxu0 0
      %1605 = vmatpush.bf16.msra.mxu0 0
      %1606 = vmatpush.bf16.msra.mxu0 0
      %1607 = vmatpush.bf16.msra.mxu0 0
      %1608 = vmatpush.bf16.msra.mxu0 %v1595
      %1609 = vmatpush.bf16.msra.mxu0 %v1594
      %1610 = vmatpush.bf16.msra.mxu0 %v1593
      %1611 = vmatpush.bf16.msra.mxu0 %v1592
      %1612 = vmatmul.bf16.gmra.mxu0 %v1602
      %v1613 = vpop.f32.mrf.mxu0
      %v1614 = vadd.f32 %v1574, %v1613
      %v1615 = vpop.f32.mrf.mxu0
      %v1616 = vadd.f32 %v1574, %v1615
      %1617 = vdwg.mxu0
      %v1618 = vadd.f32 %v1435, %v1614
      %v1619 = vadd.f32 %v1436, %v1616
      %v1620 = vld [vmem:[%s675] sm:$0x1]
      %v1621 = vld [vmem:[%s678] sm:$0x1]
      %v1622 = vsel %vm775, %v1618, 0.0
      %1623 = vadd.xlane.f32.xlu0 %v1622
      %v1624 = vpop.xlane.xlu0 %1623
      %v1625 = vsel %vm775, %v1619, 0.0
      %1626 = vadd.xlane.f32.xlu0 %v1625
      %v1627 = vpop.xlane.xlu0 %1626
      %v1628 = vmul.f32 %v1624, %v1388
      %v1629 = vmul.f32 %v1627, %v1388
      %v1630 = vsub.f32 %v1618, %v1628
      %v1631 = vsub.f32 %v1619, %v1629
      %v1632 = vmul.f32 %v1630, %v1630
      %v1633 = vmul.f32 %v1631, %v1631
      %v1634 = vsel %vm775, %v1632, 0.0
      %1635 = vadd.xlane.f32.xlu0 %v1634
      %v1636 = vpop.xlane.xlu0 %1635
      %v1637 = vsel %vm775, %v1633, 0.0
      %1638 = vadd.xlane.f32.xlu0 %v1637
      %v1639 = vpop.xlane.xlu0 %1638
      %v1640 = vmul.f32 %v1636, %v1388
      %v1641 = vmul.f32 %v1639, %v1388
      %v1642 = vadd.f32 %v1640, 1e-12
      %v1643 = vadd.f32 %v1641, 1e-12
      %v1644 = vrsqrt.pop %v1642
      %v1645 = vmul.f32 %v1644, %v1642
      %v1646 = vmul.f32 %v1645, %v1644
      %v1647 = vmul.f32 0.5, %v1646
      %v1648 = vsub.f32 1.5, %v1647
      %v1649 = vmul.f32 %v1644, %v1648
      %vm1650 = vweird.f32 %v1642
      %vm1651 = vweird.f32 %v1644
      %vm1652 = vmor %vm1650, %vm1651
      %v1653 = vsel %vm1652, %v1644, %v1649
      %v1654 = vrsqrt.pop %v1643
      %v1655 = vmul.f32 %v1654, %v1643
      %v1656 = vmul.f32 %v1655, %v1654
      %v1657 = vmul.f32 0.5, %v1656
      %v1658 = vsub.f32 1.5, %v1657
      %v1659 = vmul.f32 %v1654, %v1658
      %vm1660 = vweird.f32 %v1643
      %vm1661 = vweird.f32 %v1654
      %vm1662 = vmor %vm1660, %vm1661
      %v1663 = vsel %vm1662, %v1654, %v1659
      %v1664 = vmul.f32 %v1630, %v1653
      %v1665 = vmul.f32 %v1631, %v1663
      %v1667 = vperm.slane %v1620, 0
      %v1669 = vmul.f32 %v1664, %v1667
      %v1670 = vmul.f32 %v1665, %v1667
      %v1672 = vperm.slane %v1621, 0
      %v1674 = vadd.f32 %v1669, %v1672
      %v1675 = vadd.f32 %v1670, %v1672
      %1676 = vst.msk [vmem:[#allocation2] sm:$0xff] %vm775, %v1674
      %1677 = vst.msk [vmem:[#allocation2 + $0x8] sm:$0xff] %vm775, %v1675
      %p1678 = scmp.eq.s32.totalorder %s27, 1
      // Predicated region
      $region89: #{encoder_forward.1} parent=83 // pred_check
        %p1679 = pneg %p1678
      $region90: #{encoder_forward.1} parent=83 // pred_check_branch
        %1681 = sbr.rel (%p1679) target = $region92
      $region91: #{encoder_forward.1} parent=83 // pred_region
        %1682 = vst.msk [vmem:[%s16] sm:$0xff] %vm775, %v1674
        %1683 = vst.msk [vmem:[%s16 + $0x8] sm:$0xff] %vm775, %v1675
      $region92: #{encoder_forward.1} parent=83 // pred_fallthru
        _
      // Predicated region
      $region93: #{encoder_forward.1} parent=83 // pred_check
        %p1684 = pneg %p436
      $region94: #{encoder_forward.1} parent=83 // pred_check_branch
        %1686 = sbr.rel (%p1684) target = $region96
      $region95: #{encoder_forward.1} parent=83 // pred_region
        _
      $region96: #{encoder_forward.1} parent=83 // pred_fallthru
        _
      // Predicated region
      $region97: #{encoder_forward.1} parent=83 // pred_check
        %p1687 = pneg %p436
      $region98: #{encoder_forward.1} parent=83 // pred_check_branch
        %1689 = sbr.rel (%p1687) target = $region100
      $region99: #{encoder_forward.1} parent=83 // pred_region
        _
      $region100: #{encoder_forward.1} parent=83 // pred_fallthru
        _
    $region84: #{encoder_forward.1} parent=5 // pred_fallthru
      _
    %p1690 = scmp.le.s32.totalorder 2, %s22
    // Predicated region
    $region101: #{encoder_forward.1} parent=5 // pred_check
      %p1691 = pneg %p1690
    $region102: #{encoder_forward.1} parent=5 // pred_check_branch
      %1693 = sbr.rel (%p1691) target = $region104
    $region103: #{encoder_forward.1} parent=5 // pred_region
      %s1694 = ssub.s32 %s22, 2
    $region104: #{encoder_forward.1} parent=5 // pred_fallthru
      _
  $region6: #{encoder_forward.1} parent=0 // loop_footer
    %s26 = sadd.s32 1, %s22
  $region7: #{encoder_forward.1} parent=0 // loop_footer_branch
    %21 = sbr.rel target = $region3
  $region8: #{encoder_forward.1} parent=0 // loop_exit
    _

</llo_original>
